<compile_context>
chip_gen: v7x
topology: tpu7x:2x2x1
jax: 0.10.0
libtpu: 0.0.40
codegen_flags: <defaults>
</compile_context>

<pallas_src>
import functools
import math

import jax
import jax.numpy as jnp
from jax import lax
from jax.experimental import pallas as pl
from jax.experimental.pallas import tpu as pltpu

PI = 0.5
SIGMA_1 = math.exp(-0.0)   # 1.0
SIGMA_2 = math.exp(-6.0)
LOG_SQRT_2PI = 0.5 * math.log(2.0 * math.pi)

# Folded scale-mixture constants.
_LOG_PI = math.log(PI)
_LOG_1M_PI = math.log(1.0 - PI)
_C1 = -LOG_SQRT_2PI - math.log(SIGMA_1)
_C2 = -LOG_SQRT_2PI - math.log(SIGMA_2)
_INV_2S1SQ = 1.0 / (2.0 * SIGMA_1 ** 2)
_INV_2S2SQ = 1.0 / (2.0 * SIGMA_2 ** 2)


def _round_up(x, m):
    return (x + m - 1) // m * m


def _softplus(x):
    # Stable log1p(exp(x)).
    return jnp.maximum(x, 0.0) + jnp.log1p(jnp.exp(-jnp.abs(x)))


def _mixture_logprob(x):
    # log( PI*N(x;0,S1) + (1-PI)*N(x;0,S2) ) via logaddexp (underflow-safe).
    sq = x * x
    a = _LOG_PI + _C1 - sq * _INV_2S1SQ
    b = _LOG_1M_PI + _C2 - sq * _INV_2S2SQ
    m = jnp.maximum(a, b)
    return m + jnp.log1p(jnp.exp(-jnp.abs(a - b)))


def _fold_tile(t):
    """Elementwise-fold a (tn, tk) f32 tile into one (8, 128) block.

    VPU-only (vreg-aligned static slices + adds, no XLU cross-lane reduce),
    using a small number of running accumulators to keep vreg pressure low.
    """
    tn, tk = t.shape
    nj = tk // 128
    ng = tn // 8
    n_acc = min(8, ng)
    accs = [None] * n_acc
    for g in range(ng):
        blk = t[g * 8:(g + 1) * 8, 0:128]
        for j in range(1, nj):
            blk = blk + t[g * 8:(g + 1) * 8, j * 128:(j + 1) * 128]
        slot = g % n_acc
        accs[slot] = blk if accs[slot] is None else accs[slot] + blk
    out = accs[0]
    for a in accs[1:]:
        if a is not None:
            out = out + a
    return out


def _fold_row(v):
    """(1, tn) -> (1, 128) lane-block fold (VPU only)."""
    tn = v.shape[1]
    c = v[:, 0:128]
    for j in range(1, tn // 128):
        c = c + v[:, j * 128:(j + 1) * 128]
    return c


# ---------------------------------------------------------------------------
# Fused kernel: sample weight/bias tile + log-prob partials + matmul + bias add
# grid = (m_tiles, out_tiles, in_tiles)  ->  ("parallel","parallel","arbitrary")
# ---------------------------------------------------------------------------
def _bayes_linear_kernel(x_ref, wmu_ref, wrho_ref, weps_ref,
                         bmu_ref, brho_ref, beps_ref,
                         y_ref, lprior_ref, lpost_ref,
                         *, n_out, n_in, mxu_dtype, mask_rows, mask_cols):
    mm = pl.program_id(0)                 # batch tile      (parallel)
    nn = pl.program_id(1)                 # output-feature tile (parallel)
    kk = pl.program_id(2)                 # input-feature / reduction tile
    k_last = pl.num_programs(2) - 1
    tn, tk = wmu_ref.shape

    @pl.when(kk == 0)
    def _init():
        y_ref[...] = jnp.zeros_like(y_ref)
        lprior_ref[...] = jnp.zeros_like(lprior_ref)
        lpost_ref[...] = jnp.zeros_like(lpost_ref)

    # ---- sample the weight tile in VMEM (never written to HBM) ------------
    wmu = wmu_ref[...].astype(jnp.float32)
    wrho = wrho_ref[...].astype(jnp.float32)
    weps = weps_ref[...].astype(jnp.float32)
    sigma = _softplus(wrho)
    w = wmu + sigma * weps                                    # f32 sample

    # ---- weight log-prob partials: counted once over the batch axis --------
    @pl.when(mm == 0)
    def _weight_logprobs():
        def accum(valid):
            # posterior: (w-mu)^2/(2 sigma^2) == eps^2/2 (reparameterisation)
            lp_post = (-LOG_SQRT_2PI) - jnp.log(sigma) - 0.5 * (weps * weps)
            lp_prior = _mixture_logprob(w)
            if valid is not None:
                lp_post = jnp.where(valid, lp_post, 0.0)
                lp_prior = jnp.where(valid, lp_prior, 0.0)
            lprior_ref[...] = lprior_ref[...] + _fold_tile(lp_prior)[None, None]
            lpost_ref[...] = lpost_ref[...] + _fold_tile(lp_post)[None, None]

        if not (mask_rows or mask_cols):
            accum(None)
        else:
            # Padding masks only on boundary tiles; interior tiles skip the
            # iota/compare/select chain entirely.
            conds = []
            if mask_rows:
                conds.append(nn == pl.num_programs(1) - 1)
            if mask_cols:
                conds.append(kk == pl.num_programs(2) - 1)
            is_edge = conds[0]
            for c in conds[1:]:
                is_edge = jnp.logical_or(is_edge, c)

            @pl.when(is_edge)
            def _edge():
                valid = None
                if mask_rows:
                    row = nn * tn + lax.broadcasted_iota(jnp.int32, (tn, tk), 0)
                    valid = row < n_out
                if mask_cols:
                    col = kk * tk + lax.broadcasted_iota(jnp.int32, (tn, tk), 1)
                    cvalid = col < n_in
                    valid = cvalid if valid is None else valid & cvalid
                accum(valid)

            @pl.when(jnp.logical_not(is_edge))
            def _interior():
                accum(None)

    # ---- MXU: contract last dims of both operands (== x @ w.T, no transpose)
    acc = lax.dot_general(
        x_ref[...].astype(mxu_dtype), w.astype(mxu_dtype),
        dimension_numbers=(((1,), (1,)), ((), ())),
        preferred_element_type=jnp.float32)
    y_ref[...] = y_ref[...] + acc

    # ---- bias: sample + add (every (m,n) tile) + log-probs (mm==0 only) ----
    @pl.when(kk == k_last)
    def _finalize():
        bmu = bmu_ref[...].astype(jnp.float32)
        brho = brho_ref[...].astype(jnp.float32)
        beps = beps_ref[...].astype(jnp.float32)
        bsigma = _softplus(brho)
        b = bmu + bsigma * beps                               # (1, tn)
        y_ref[...] = y_ref[...] + b                           # broadcast over M

        @pl.when(mm == 0)
        def _bias_logprobs():
            blp_post = (-LOG_SQRT_2PI) - jnp.log(bsigma) - 0.5 * (beps * beps)
            blp_prior = _mixture_logprob(b)
            if mask_rows:
                col = nn * tn + lax.broadcasted_iota(jnp.int32, (1, tn), 1)
                bvalid = col < n_out
                blp_post = jnp.where(bvalid, blp_post, 0.0)
                blp_prior = jnp.where(bvalid, blp_prior, 0.0)
            lprior_ref[0:1, 0:1, 0:1, :] = (
                lprior_ref[0:1, 0:1, 0:1, :] + _fold_row(blp_prior)[None, None])
            lpost_ref[0:1, 0:1, 0:1, :] = (
                lpost_ref[0:1, 0:1, 0:1, :] + _fold_row(blp_post)[None, None])


# ---------------------------------------------------------------------------
# Module wrapper
# ---------------------------------------------------------------------------
def bayesian_linear_forward(x, params, eps_w, eps_b, *,
                            tile_out=512, tile_in=512, tile_batch=1024,
                            mxu_dtype=jnp.bfloat16,
                            param_dtype=jnp.float32,
                            eps_dtype=jnp.bfloat16):
    """Training / sample=True path of BayesianLinear.forward.

    Returns (output[M, out_features], log_prior, log_variational_posterior).
    mxu_dtype=jnp.float32 gives an exact-f32 matmul (slower on the MXU);
    param_dtype=jnp.bfloat16 additionally halves the mu/rho HBM streams
    (small documented accuracy trade).
    """
    x = jnp.asarray(x, mxu_dtype)                      # x only ever feeds the MXU
    wmu = jnp.asarray(params["weight_mu"], param_dtype)
    wrho = jnp.asarray(params["weight_rho"], param_dtype)
    weps = jnp.asarray(eps_w, eps_dtype)               # pure noise -> bf16 safe
    bmu = jnp.asarray(params["bias_mu"], jnp.float32).reshape(1, -1)
    brho = jnp.asarray(params["bias_rho"], jnp.float32).reshape(1, -1)
    beps = jnp.asarray(eps_b, jnp.float32).reshape(1, -1)

    out_f, in_f = wmu.shape
    m = x.shape[0]

    # Lane/sublane-dense tile sizes (multiples of (16, 128) to cover bf16).
    tn = min(tile_out, _round_up(out_f, 128))
    tk = min(tile_in, _round_up(in_f, 128))
    tm = min(tile_batch, _round_up(m, 16))
    # v7x megacore: expose >= 2 'parallel' blocks when the problem would
    # otherwise be a single block (split the output-feature tile).
    if (_round_up(m, tm) // tm) * (_round_up(out_f, tn) // tn) == 1 and tn >= 256:
        tn = _round_up((tn + 1) // 2, 128)

    out_p = _round_up(out_f, tn)
    in_p = _round_up(in_f, tk)
    m_p = _round_up(m, tm)
    grid_m, grid_n, grid_k = m_p // tm, out_p // tn, in_p // tk
    mask_rows = out_p != out_f
    mask_cols = in_p != in_f

    def pad2(a, r, c):
        pr, pc = r - a.shape[0], c - a.shape[1]
        return jnp.pad(a, ((0, pr), (0, pc))) if (pr or pc) else a

    x_p = pad2(x, m_p, in_p)
    wmu_p, wrho_p, weps_p = (pad2(a, out_p, in_p) for a in (wmu, wrho, weps))
    bmu_p, brho_p, beps_p = (pad2(a, 1, out_p) for a in (bmu, brho, beps))

    # --- VMEM budget (double-buffered blocks + elementwise temporaries) -----
    isz = lambda a: jnp.dtype(a.dtype).itemsize
    x_blk = tm * tk * isz(x_p)
    w_blk = tn * tk * (2 * isz(wmu_p) + isz(weps_p))
    b_blk = 3 * tn * 4
    y_blk = tm * tn * 4
    lp_blk = 2 * 8 * 128 * 4
    vmem_est = 2 * (x_blk + w_blk + b_blk + y_blk + lp_blk) + 8 * tn * tk * 4
    vmem_limit = int(min(max(vmem_est + (8 << 20), 32 << 20), 64 << 20))

    cost = pl.CostEstimate(
        flops=2 * m_p * out_p * in_p,
        transcendentals=5 * out_p * in_p + 5 * out_p,
        bytes_accessed=(grid_n * m_p * in_p * isz(x_p)
                        + grid_m * out_p * in_p * (2 * isz(wmu_p) + isz(weps_p))
                        + 3 * out_p * 4
                        + m_p * out_p * 4
                        + 2 * grid_m * grid_n * 8 * 128 * 4))

    kernel = functools.partial(
        _bayes_linear_kernel, n_out=out_f, n_in=in_f,
        mxu_dtype=mxu_dtype, mask_rows=mask_rows, mask_cols=mask_cols)

    y_pad, lp_prior_parts, lp_post_parts = pl.pallas_call(
        kernel,
        grid=(grid_m, grid_n, grid_k),
        in_specs=[
            pl.BlockSpec((tm, tk), lambda mm, nn, kk: (mm, kk)),   # x (bf16)
            pl.BlockSpec((tn, tk), lambda mm, nn, kk: (nn, kk)),   # weight_mu
            pl.BlockSpec((tn, tk), lambda mm, nn, kk: (nn, kk)),   # weight_rho
            pl.BlockSpec((tn, tk), lambda mm, nn, kk: (nn, kk)),   # weight eps
            pl.BlockSpec((1, tn), lambda mm, nn, kk: (0, nn)),     # bias_mu
            pl.BlockSpec((1, tn), lambda mm, nn, kk: (0, nn)),     # bias_rho
            pl.BlockSpec((1, tn), lambda mm, nn, kk: (0, nn)),     # bias eps
        ],
        out_specs=(
            pl.BlockSpec((tm, tn), lambda mm, nn, kk: (mm, nn)),             # y
            pl.BlockSpec((1, 1, 8, 128), lambda mm, nn, kk: (mm, nn, 0, 0)),  # prior
            pl.BlockSpec((1, 1, 8, 128), lambda mm, nn, kk: (mm, nn, 0, 0)),  # post
        ),
        out_shape=(
            jax.ShapeDtypeStruct((m_p, out_p), jnp.float32),
            jax.ShapeDtypeStruct((grid_m, grid_n, 8, 128), jnp.float32),
            jax.ShapeDtypeStruct((grid_m, grid_n, 8, 128), jnp.float32),
        ),
        compiler_params=pltpu.CompilerParams(
            dimension_semantics=("parallel", "parallel", "arbitrary"),
            vmem_limit_bytes=vmem_limit),
        cost_estimate=cost,
    )(x_p, wmu_p, wrho_p, weps_p, bmu_p, brho_p, beps_p)

    y = y_pad[:m, :out_f]
    log_prior = jnp.sum(lp_prior_parts)
    log_post = jnp.sum(lp_post_parts)
    return y, log_prior, log_post


def init_params(key, in_features, out_features):
    k1, k2, k3, k4 = jax.random.split(key, 4)
    return {
        "weight_mu": jax.random.uniform(k1, (out_features, in_features),
                                        jnp.float32, -0.2, 0.2),
        "weight_rho": jax.random.uniform(k2, (out_features, in_features),
                                         jnp.float32, -5.0, -4.0),
        "bias_mu": jax.random.uniform(k3, (out_features,),
                                      jnp.float32, -0.2, 0.2),
        "bias_rho": jax.random.uniform(k4, (out_features,),
                                       jnp.float32, -5.0, -4.0),
    }


if __name__ == "__main__":
    key = jax.random.PRNGKey(0)
    batch, in_features, out_features = 8, 32, 16

    kp, kx, kew, keb = jax.random.split(key, 4)
    params = init_params(kp, in_features, out_features)
    x = jax.random.normal(kx, (batch, in_features), jnp.float32)
    eps_w = jax.random.normal(kew, (out_features, in_features), jnp.float32)
    eps_b = jax.random.normal(keb, (out_features,), jnp.float32)

    fwd = jax.jit(bayesian_linear_forward)
    y, log_prior, log_post = fwd(x, params, eps_w, eps_b)
    jax.block_until_ready((y, log_prior, log_post))

    # ---- pure-JAX f32 reference (naive formulas, like the PyTorch module) ----
    # The kernel streams eps_w in bf16; use the same rounded noise here so the
    # comparison isolates kernel numerics rather than a different noise draw.
    eps_w_k = eps_w.astype(jnp.bfloat16).astype(jnp.float32)
    wsig = jnp.log1p(jnp.exp(params["weight_rho"]))
    bsig = jnp.log1p(jnp.exp(params["bias_rho"]))
    w_s = params["weight_mu"] + wsig * eps_w_k
    b_s = params["bias_mu"] + bsig * eps_b
    y_ref = x @ w_s.T + b_s

    def gauss_lp_sum(v, mu, sig):
        return jnp.sum(-LOG_SQRT_2PI - jnp.log(sig)
                       - (v - mu) ** 2 / (2.0 * sig ** 2))

    def mix_lp_sum(v):
        p1 = jnp.exp(-LOG_SQRT_2PI - math.log(SIGMA_1) - v ** 2 / (2.0 * SIGMA_1 ** 2))
        p2 = jnp.exp(-LOG_SQRT_2PI - math.log(SIGMA_2) - v ** 2 / (2.0 * SIGMA_2 ** 2))
        return jnp.sum(jnp.log(PI * p1 + (1.0 - PI) * p2))

    log_post_ref = (gauss_lp_sum(w_s, params["weight_mu"], wsig)
                    + gauss_lp_sum(b_s, params["bias_mu"], bsig))
    log_prior_ref = mix_lp_sum(w_s) + mix_lp_sum(b_s)

    assert y.shape == (batch, out_features)
    # bf16 MXU operands with f32 accumulation -> compare to f32 ref loosely.
    assert jnp.allclose(y, y_ref, atol=2e-2, rtol=2e-2)
    assert jnp.allclose(log_post, log_post_ref, rtol=1e-3, atol=1e-2)
    assert jnp.allclose(log_prior, log_prior_ref, rtol=1e-3, atol=1e-2)

    print("KERNEL_OK")
</pallas_src>

<mosaic_0001>
module attributes {stable_mosaic.version = 11 : i64} {
  func.func @_bayes_linear_kernel(%arg0: i32, %arg1: i32, %arg2: i32, %arg3: memref<16x128xbf16, #tpu.memory_space<vmem>>, %arg4: memref<128x128xf32, #tpu.memory_space<vmem>>, %arg5: memref<128x128xf32, #tpu.memory_space<vmem>>, %arg6: memref<128x128xbf16, #tpu.memory_space<vmem>>, %arg7: memref<1x128xf32, #tpu.memory_space<vmem>>, %arg8: memref<1x128xf32, #tpu.memory_space<vmem>>, %arg9: memref<1x128xf32, #tpu.memory_space<vmem>>, %arg10: memref<16x128xf32, #tpu.memory_space<vmem>>, %arg11: memref<1x1x8x128xf32, #tpu.memory_space<vmem>>, %arg12: memref<1x1x8x128xf32, #tpu.memory_space<vmem>>) attributes {dimension_semantics = [#tpu.dimension_semantics<parallel>, #tpu.dimension_semantics<parallel>, #tpu.dimension_semantics<arbitrary>], iteration_bounds = array<i64: 1, 1, 1>, scalar_prefetch = 0 : i64, scratch_operands = 0 : i64, tpu.core_type = #tpu.core_type<tc>, window_params = [{transform_indices = @transform_0, window_bounds = array<i64: 16, 128>}, {transform_indices = @transform_1, window_bounds = array<i64: 128, 128>}, {transform_indices = @transform_2, window_bounds = array<i64: 128, 128>}, {transform_indices = @transform_3, window_bounds = array<i64: 128, 128>}, {transform_indices = @transform_4, window_bounds = array<i64: 1, 128>}, {transform_indices = @transform_5, window_bounds = array<i64: 1, 128>}, {transform_indices = @transform_6, window_bounds = array<i64: 1, 128>}, {transform_indices = @transform_7, window_bounds = array<i64: 16, 128>}, {transform_indices = @transform_8, window_bounds = array<i64: 1, 1, 8, 128>}, {transform_indices = @transform_9, window_bounds = array<i64: 1, 1, 8, 128>}]} {
    %c0_i32 = arith.constant 0 : i32
    %0 = arith.cmpi eq, %arg2, %c0_i32 : i32
    %1 = arith.extui %0 : i1 to i32
    %c0_i32_0 = arith.constant 0 : i32
    %2 = arith.cmpi ne, %1, %c0_i32_0 : i32
    scf.if %2 {
      %cst_18 = arith.constant 0.000000e+00 : f32
      %29 = vector.broadcast %cst_18 : f32 to vector<16x128xf32>
      %c0_19 = arith.constant 0 : index
      %c0_20 = arith.constant 0 : index
      %30 = vector.load %arg10[%c0_19, %c0_20] : memref<16x128xf32, #tpu.memory_space<vmem>>, vector<16x128xf32>
      tpu.vector_store %arg10[%c0_19, %c0_20], %29 {strides = array<i32>} : memref<16x128xf32, #tpu.memory_space<vmem>>, vector<16x128xf32>,
      %cst_21 = arith.constant 0.000000e+00 : f32
      %31 = vector.broadcast %cst_21 : f32 to vector<1x1x8x128xf32>
      %c0_22 = arith.constant 0 : index
      %c0_23 = arith.constant 0 : index
      %c0_24 = arith.constant 0 : index
      %c0_25 = arith.constant 0 : index
      %32 = vector.load %arg11[%c0_22, %c0_23, %c0_24, %c0_25] : memref<1x1x8x128xf32, #tpu.memory_space<vmem>>, vector<1x1x8x128xf32>
      tpu.vector_store %arg11[%c0_22, %c0_23, %c0_24, %c0_25], %31 {strides = array<i32>} : memref<1x1x8x128xf32, #tpu.memory_space<vmem>>, vector<1x1x8x128xf32>,
      %cst_26 = arith.constant 0.000000e+00 : f32
      %33 = vector.broadcast %cst_26 : f32 to vector<1x1x8x128xf32>
      %c0_27 = arith.constant 0 : index
      %c0_28 = arith.constant 0 : index
      %c0_29 = arith.constant 0 : index
      %c0_30 = arith.constant 0 : index
      %34 = vector.load %arg12[%c0_27, %c0_28, %c0_29, %c0_30] : memref<1x1x8x128xf32, #tpu.memory_space<vmem>>, vector<1x1x8x128xf32>
      tpu.vector_store %arg12[%c0_27, %c0_28, %c0_29, %c0_30], %33 {strides = array<i32>} : memref<1x1x8x128xf32, #tpu.memory_space<vmem>>, vector<1x1x8x128xf32>,
    } else {
    }
    %c0 = arith.constant 0 : index
    %c0_1 = arith.constant 0 : index
    %3 = vector.load %arg4[%c0, %c0_1] : memref<128x128xf32, #tpu.memory_space<vmem>>, vector<128x128xf32>
    %c0_2 = arith.constant 0 : index
    %c0_3 = arith.constant 0 : index
    %4 = vector.load %arg5[%c0_2, %c0_3] : memref<128x128xf32, #tpu.memory_space<vmem>>, vector<128x128xf32>
    %c0_4 = arith.constant 0 : index
    %c0_5 = arith.constant 0 : index
    %5 = vector.load %arg6[%c0_4, %c0_5] : memref<128x128xbf16, #tpu.memory_space<vmem>>, vector<128x128xbf16>
    %6 = arith.extf %5 : vector<128x128xbf16> to vector<128x128xf32>
    %cst = arith.constant 0.000000e+00 : f32
    %7 = vector.broadcast %cst : f32 to vector<128x128xf32>
    %8 = arith.maximumf %4, %7 : vector<128x128xf32>
    %9 = math.absf %4 : vector<128x128xf32>
    %cst_6 = arith.constant 0.000000e+00 : f32
    %10 = vector.broadcast %cst_6 : f32 to vector<128x128xf32>
    %11 = arith.subf %10, %9 : vector<128x128xf32>
    %12 = math.exp %11 : vector<128x128xf32>
    %13 = math.log1p %12 : vector<128x128xf32>
    %14 = arith.addf %8, %13 : vector<128x128xf32>
    %15 = arith.mulf %14, %6 : vector<128x128xf32>
    %16 = arith.addf %3, %15 : vector<128x128xf32>
    %c0_i32_7 = arith.constant 0 : i32
    %17 = arith.cmpi eq, %arg0, %c0_i32_7 : i32
    %18 = arith.extui %17 : i1 to i32
    %c0_i32_8 = arith.constant 0 : i32
    %19 = arith.cmpi ne, %18, %c0_i32_8 : i32
    scf.if %19 {
      %c0_i32_18 = arith.constant 0 : i32
      %29 = arith.cmpi eq, %arg1, %c0_i32_18 : i32
      %c0_i32_19 = arith.constant 0 : i32
      %30 = arith.cmpi eq, %arg2, %c0_i32_19 : i32
      %31 = arith.ori %29, %30 : i1
      %32 = arith.extui %31 : i1 to i32
      %c0_i32_20 = arith.constant 0 : i32
      %33 = arith.cmpi ne, %32, %c0_i32_20 : i32
      scf.if %33 {
        %c128_i32 = arith.constant 128 : i32
        %37 = arith.muli %arg1, %c128_i32 : i32
        %38 = tpu.iota {dimensions = array<i32: 0>} : vector<128x128xi32>
        %39 = vector.broadcast %37 : i32 to vector<128x128xi32>
        %40 = arith.addi %39, %38 : vector<128x128xi32>
        %c16_i32 = arith.constant 16 : i32
        %41 = vector.broadcast %c16_i32 : i32 to vector<128x128xi32>
        %42 = arith.cmpi slt, %40, %41 : vector<128x128xi32>
        %c128_i32_22 = arith.constant 128 : i32
        %43 = arith.muli %arg2, %c128_i32_22 : i32
        %44 = tpu.iota {dimensions = array<i32: 1>} : vector<128x128xi32>
        %45 = vector.broadcast %43 : i32 to vector<128x128xi32>
        %46 = arith.addi %45, %44 : vector<128x128xi32>
        %c32_i32 = arith.constant 32 : i32
        %47 = vector.broadcast %c32_i32 : i32 to vector<128x128xi32>
        %48 = arith.cmpi slt, %46, %47 : vector<128x128xi32>
        %49 = arith.andi %42, %48 : vector<128x128xi1>
        %50 = math.log %14 : vector<128x128xf32>
        %cst_23 = arith.constant -0.918938517 : f32
        %51 = vector.broadcast %cst_23 : f32 to vector<128x128xf32>
        %52 = arith.subf %51, %50 : vector<128x128xf32>
        %53 = arith.mulf %6, %6 : vector<128x128xf32>
        %cst_24 = arith.constant 5.000000e-01 : f32
        %54 = vector.broadcast %cst_24 : f32 to vector<128x128xf32>
        %55 = arith.mulf %54, %53 : vector<128x128xf32>
        %56 = arith.subf %52, %55 : vector<128x128xf32>
        %57 = arith.mulf %16, %16 : vector<128x128xf32>
        %cst_25 = arith.constant 5.000000e-01 : f32
        %58 = vector.broadcast %cst_25 : f32 to vector<128x128xf32>
        %59 = arith.mulf %57, %58 : vector<128x128xf32>
        %cst_26 = arith.constant -1.6120857 : f32
        %60 = vector.broadcast %cst_26 : f32 to vector<128x128xf32>
        %61 = arith.subf %60, %59 : vector<128x128xf32>
        %cst_27 = arith.constant 81377.3984 : f32
        %62 = vector.broadcast %cst_27 : f32 to vector<128x128xf32>
        %63 = arith.mulf %57, %62 : vector<128x128xf32>
        %cst_28 = arith.constant 4.38791418 : f32
        %64 = vector.broadcast %cst_28 : f32 to vector<128x128xf32>
        %65 = arith.subf %64, %63 : vector<128x128xf32>
        %66 = arith.maximumf %61, %65 : vector<128x128xf32>
        %67 = arith.subf %61, %65 : vector<128x128xf32>
        %68 = math.absf %67 : vector<128x128xf32>
        %cst_29 = arith.constant 0.000000e+00 : f32
        %69 = vector.broadcast %cst_29 : f32 to vector<128x128xf32>
        %70 = arith.subf %69, %68 : vector<128x128xf32>
        %71 = math.exp %70 : vector<128x128xf32>
        %72 = math.log1p %71 : vector<128x128xf32>
        %73 = arith.addf %66, %72 : vector<128x128xf32>
        %cst_30 = arith.constant 0.000000e+00 : f32
        %74 = vector.broadcast %cst_30 : f32 to vector<128x128xf32>
        %75 = arith.select %49, %56, %74 : vector<128x128xi1>, vector<128x128xf32>
        %cst_31 = arith.constant 0.000000e+00 : f32
        %76 = vector.broadcast %cst_31 : f32 to vector<128x128xf32>
        %77 = arith.select %49, %73, %76 : vector<128x128xi1>, vector<128x128xf32>
        %c0_32 = arith.constant 0 : index
        %c0_33 = arith.constant 0 : index
        %c0_34 = arith.constant 0 : index
        %c0_35 = arith.constant 0 : index
        %78 = vector.load %arg11[%c0_32, %c0_33, %c0_34, %c0_35] : memref<1x1x8x128xf32, #tpu.memory_space<vmem>>, vector<1x1x8x128xf32>
        %79 = vector.extract_strided_slice %77 {offsets = [0, 0], sizes = [8, 128], strides = [1, 1]} : vector<128x128xf32> to vector<8x128xf32>
        %80 = vector.extract_strided_slice %77 {offsets = [8, 0], sizes = [8, 128], strides = [1, 1]} : vector<128x128xf32> to vector<8x128xf32>
        %81 = vector.extract_strided_slice %77 {offsets = [16, 0], sizes = [8, 128], strides = [1, 1]} : vector<128x128xf32> to vector<8x128xf32>
        %82 = vector.extract_strided_slice %77 {offsets = [24, 0], sizes = [8, 128], strides = [1, 1]} : vector<128x128xf32> to vector<8x128xf32>
        %83 = vector.extract_strided_slice %77 {offsets = [32, 0], sizes = [8, 128], strides = [1, 1]} : vector<128x128xf32> to vector<8x128xf32>
        %84 = vector.extract_strided_slice %77 {offsets = [40, 0], sizes = [8, 128], strides = [1, 1]} : vector<128x128xf32> to vector<8x128xf32>
        %85 = vector.extract_strided_slice %77 {offsets = [48, 0], sizes = [8, 128], strides = [1, 1]} : vector<128x128xf32> to vector<8x128xf32>
        %86 = vector.extract_strided_slice %77 {offsets = [56, 0], sizes = [8, 128], strides = [1, 1]} : vector<128x128xf32> to vector<8x128xf32>
        %87 = vector.extract_strided_slice %77 {offsets = [64, 0], sizes = [8, 128], strides = [1, 1]} : vector<128x128xf32> to vector<8x128xf32>
        %88 = arith.addf %79, %87 : vector<8x128xf32>
        %89 = vector.extract_strided_slice %77 {offsets = [72, 0], sizes = [8, 128], strides = [1, 1]} : vector<128x128xf32> to vector<8x128xf32>
        %90 = arith.addf %80, %89 : vector<8x128xf32>
        %91 = vector.extract_strided_slice %77 {offsets = [80, 0], sizes = [8, 128], strides = [1, 1]} : vector<128x128xf32> to vector<8x128xf32>
        %92 = arith.addf %81, %91 : vector<8x128xf32>
        %93 = vector.extract_strided_slice %77 {offsets = [88, 0], sizes = [8, 128], strides = [1, 1]} : vector<128x128xf32> to vector<8x128xf32>
        %94 = arith.addf %82, %93 : vector<8x128xf32>
        %95 = vector.extract_strided_slice %77 {offsets = [96, 0], sizes = [8, 128], strides = [1, 1]} : vector<128x128xf32> to vector<8x128xf32>
        %96 = arith.addf %83, %95 : vector<8x128xf32>
        %97 = vector.extract_strided_slice %77 {offsets = [104, 0], sizes = [8, 128], strides = [1, 1]} : vector<128x128xf32> to vector<8x128xf32>
        %98 = arith.addf %84, %97 : vector<8x128xf32>
        %99 = vector.extract_strided_slice %77 {offsets = [112, 0], sizes = [8, 128], strides = [1, 1]} : vector<128x128xf32> to vector<8x128xf32>
        %100 = arith.addf %85, %99 : vector<8x128xf32>
        %101 = vector.extract_strided_slice %77 {offsets = [120, 0], sizes = [8, 128], strides = [1, 1]} : vector<128x128xf32> to vector<8x128xf32>
        %102 = arith.addf %86, %101 : vector<8x128xf32>
        %103 = arith.addf %88, %90 : vector<8x128xf32>
        %104 = arith.addf %103, %92 : vector<8x128xf32>
        %105 = arith.addf %104, %94 : vector<8x128xf32>
        %106 = arith.addf %105, %96 : vector<8x128xf32>
        %107 = arith.addf %106, %98 : vector<8x128xf32>
        %108 = arith.addf %107, %100 : vector<8x128xf32>
        %109 = arith.addf %108, %102 : vector<8x128xf32>
        %110 = vector.shape_cast %109 : vector<8x128xf32> to vector<1x1x8x128xf32>
        %111 = arith.addf %78, %110 : vector<1x1x8x128xf32>
        %c0_36 = arith.constant 0 : index
        %c0_37 = arith.constant 0 : index
        %c0_38 = arith.constant 0 : index
        %c0_39 = arith.constant 0 : index
        %112 = vector.load %arg11[%c0_36, %c0_37, %c0_38, %c0_39] : memref<1x1x8x128xf32, #tpu.memory_space<vmem>>, vector<1x1x8x128xf32>
        tpu.vector_store %arg11[%c0_36, %c0_37, %c0_38, %c0_39], %111 {strides = array<i32>} : memref<1x1x8x128xf32, #tpu.memory_space<vmem>>, vector<1x1x8x128xf32>,
        %c0_40 = arith.constant 0 : index
        %c0_41 = arith.constant 0 : index
        %c0_42 = arith.constant 0 : index
        %c0_43 = arith.constant 0 : index
        %113 = vector.load %arg12[%c0_40, %c0_41, %c0_42, %c0_43] : memref<1x1x8x128xf32, #tpu.memory_space<vmem>>, vector<1x1x8x128xf32>
        %114 = vector.extract_strided_slice %75 {offsets = [0, 0], sizes = [8, 128], strides = [1, 1]} : vector<128x128xf32> to vector<8x128xf32>
        %115 = vector.extract_strided_slice %75 {offsets = [8, 0], sizes = [8, 128], strides = [1, 1]} : vector<128x128xf32> to vector<8x128xf32>
        %116 = vector.extract_strided_slice %75 {offsets = [16, 0], sizes = [8, 128], strides = [1, 1]} : vector<128x128xf32> to vector<8x128xf32>
        %117 = vector.extract_strided_slice %75 {offsets = [24, 0], sizes = [8, 128], strides = [1, 1]} : vector<128x128xf32> to vector<8x128xf32>
        %118 = vector.extract_strided_slice %75 {offsets = [32, 0], sizes = [8, 128], strides = [1, 1]} : vector<128x128xf32> to vector<8x128xf32>
        %119 = vector.extract_strided_slice %75 {offsets = [40, 0], sizes = [8, 128], strides = [1, 1]} : vector<128x128xf32> to vector<8x128xf32>
        %120 = vector.extract_strided_slice %75 {offsets = [48, 0], sizes = [8, 128], strides = [1, 1]} : vector<128x128xf32> to vector<8x128xf32>
        %121 = vector.extract_strided_slice %75 {offsets = [56, 0], sizes = [8, 128], strides = [1, 1]} : vector<128x128xf32> to vector<8x128xf32>
        %122 = vector.extract_strided_slice %75 {offsets = [64, 0], sizes = [8, 128], strides = [1, 1]} : vector<128x128xf32> to vector<8x128xf32>
        %123 = arith.addf %114, %122 : vector<8x128xf32>
        %124 = vector.extract_strided_slice %75 {offsets = [72, 0], sizes = [8, 128], strides = [1, 1]} : vector<128x128xf32> to vector<8x128xf32>
        %125 = arith.addf %115, %124 : vector<8x128xf32>
        %126 = vector.extract_strided_slice %75 {offsets = [80, 0], sizes = [8, 128], strides = [1, 1]} : vector<128x128xf32> to vector<8x128xf32>
        %127 = arith.addf %116, %126 : vector<8x128xf32>
        %128 = vector.extract_strided_slice %75 {offsets = [88, 0], sizes = [8, 128], strides = [1, 1]} : vector<128x128xf32> to vector<8x128xf32>
        %129 = arith.addf %117, %128 : vector<8x128xf32>
        %130 = vector.extract_strided_slice %75 {offsets = [96, 0], sizes = [8, 128], strides = [1, 1]} : vector<128x128xf32> to vector<8x128xf32>
        %131 = arith.addf %118, %130 : vector<8x128xf32>
        %132 = vector.extract_strided_slice %75 {offsets = [104, 0], sizes = [8, 128], strides = [1, 1]} : vector<128x128xf32> to vector<8x128xf32>
        %133 = arith.addf %119, %132 : vector<8x128xf32>
        %134 = vector.extract_strided_slice %75 {offsets = [112, 0], sizes = [8, 128], strides = [1, 1]} : vector<128x128xf32> to vector<8x128xf32>
        %135 = arith.addf %120, %134 : vector<8x128xf32>
        %136 = vector.extract_strided_slice %75 {offsets = [120, 0], sizes = [8, 128], strides = [1, 1]} : vector<128x128xf32> to vector<8x128xf32>
        %137 = arith.addf %121, %136 : vector<8x128xf32>
        %138 = arith.addf %123, %125 : vector<8x128xf32>
        %139 = arith.addf %138, %127 : vector<8x128xf32>
        %140 = arith.addf %139, %129 : vector<8x128xf32>
        %141 = arith.addf %140, %131 : vector<8x128xf32>
        %142 = arith.addf %141, %133 : vector<8x128xf32>
        %143 = arith.addf %142, %135 : vector<8x128xf32>
        %144 = arith.addf %143, %137 : vector<8x128xf32>
        %145 = vector.shape_cast %144 : vector<8x128xf32> to vector<1x1x8x128xf32>
        %146 = arith.addf %113, %145 : vector<1x1x8x128xf32>
        %c0_44 = arith.constant 0 : index
        %c0_45 = arith.constant 0 : index
        %c0_46 = arith.constant 0 : index
        %c0_47 = arith.constant 0 : index
        %147 = vector.load %arg12[%c0_44, %c0_45, %c0_46, %c0_47] : memref<1x1x8x128xf32, #tpu.memory_space<vmem>>, vector<1x1x8x128xf32>
        tpu.vector_store %arg12[%c0_44, %c0_45, %c0_46, %c0_47], %146 {strides = array<i32>} : memref<1x1x8x128xf32, #tpu.memory_space<vmem>>, vector<1x1x8x128xf32>,
      } else {
      }
      %true = arith.constant true
      %34 = arith.xori %31, %true : i1
      %35 = arith.extui %34 : i1 to i32
      %c0_i32_21 = arith.constant 0 : i32
      %36 = arith.cmpi ne, %35, %c0_i32_21 : i32
      scf.if %36 {
        %37 = math.log %14 : vector<128x128xf32>
        %cst_22 = arith.constant -0.918938517 : f32
        %38 = vector.broadcast %cst_22 : f32 to vector<128x128xf32>
        %39 = arith.subf %38, %37 : vector<128x128xf32>
        %40 = arith.mulf %6, %6 : vector<128x128xf32>
        %cst_23 = arith.constant 5.000000e-01 : f32
        %41 = vector.broadcast %cst_23 : f32 to vector<128x128xf32>
        %42 = arith.mulf %41, %40 : vector<128x128xf32>
        %43 = arith.subf %39, %42 : vector<128x128xf32>
        %44 = arith.mulf %16, %16 : vector<128x128xf32>
        %cst_24 = arith.constant 5.000000e-01 : f32
        %45 = vector.broadcast %cst_24 : f32 to vector<128x128xf32>
        %46 = arith.mulf %44, %45 : vector<128x128xf32>
        %cst_25 = arith.constant -1.6120857 : f32
        %47 = vector.broadcast %cst_25 : f32 to vector<128x128xf32>
        %48 = arith.subf %47, %46 : vector<128x128xf32>
        %cst_26 = arith.constant 81377.3984 : f32
        %49 = vector.broadcast %cst_26 : f32 to vector<128x128xf32>
        %50 = arith.mulf %44, %49 : vector<128x128xf32>
        %cst_27 = arith.constant 4.38791418 : f32
        %51 = vector.broadcast %cst_27 : f32 to vector<128x128xf32>
        %52 = arith.subf %51, %50 : vector<128x128xf32>
        %53 = arith.maximumf %48, %52 : vector<128x128xf32>
        %54 = arith.subf %48, %52 : vector<128x128xf32>
        %55 = math.absf %54 : vector<128x128xf32>
        %cst_28 = arith.constant 0.000000e+00 : f32
        %56 = vector.broadcast %cst_28 : f32 to vector<128x128xf32>
        %57 = arith.subf %56, %55 : vector<128x128xf32>
        %58 = math.exp %57 : vector<128x128xf32>
        %59 = math.log1p %58 : vector<128x128xf32>
        %60 = arith.addf %53, %59 : vector<128x128xf32>
        %c0_29 = arith.constant 0 : index
        %c0_30 = arith.constant 0 : index
        %c0_31 = arith.constant 0 : index
        %c0_32 = arith.constant 0 : index
        %61 = vector.load %arg11[%c0_29, %c0_30, %c0_31, %c0_32] : memref<1x1x8x128xf32, #tpu.memory_space<vmem>>, vector<1x1x8x128xf32>
        %62 = vector.extract_strided_slice %60 {offsets = [0, 0], sizes = [8, 128], strides = [1, 1]} : vector<128x128xf32> to vector<8x128xf32>
        %63 = vector.extract_strided_slice %60 {offsets = [8, 0], sizes = [8, 128], strides = [1, 1]} : vector<128x128xf32> to vector<8x128xf32>
        %64 = vector.extract_strided_slice %60 {offsets = [16, 0], sizes = [8, 128], strides = [1, 1]} : vector<128x128xf32> to vector<8x128xf32>
        %65 = vector.extract_strided_slice %60 {offsets = [24, 0], sizes = [8, 128], strides = [1, 1]} : vector<128x128xf32> to vector<8x128xf32>
        %66 = vector.extract_strided_slice %60 {offsets = [32, 0], sizes = [8, 128], strides = [1, 1]} : vector<128x128xf32> to vector<8x128xf32>
        %67 = vector.extract_strided_slice %60 {offsets = [40, 0], sizes = [8, 128], strides = [1, 1]} : vector<128x128xf32> to vector<8x128xf32>
        %68 = vector.extract_strided_slice %60 {offsets = [48, 0], sizes = [8, 128], strides = [1, 1]} : vector<128x128xf32> to vector<8x128xf32>
        %69 = vector.extract_strided_slice %60 {offsets = [56, 0], sizes = [8, 128], strides = [1, 1]} : vector<128x128xf32> to vector<8x128xf32>
        %70 = vector.extract_strided_slice %60 {offsets = [64, 0], sizes = [8, 128], strides = [1, 1]} : vector<128x128xf32> to vector<8x128xf32>
        %71 = arith.addf %62, %70 : vector<8x128xf32>
        %72 = vector.extract_strided_slice %60 {offsets = [72, 0], sizes = [8, 128], strides = [1, 1]} : vector<128x128xf32> to vector<8x128xf32>
        %73 = arith.addf %63, %72 : vector<8x128xf32>
        %74 = vector.extract_strided_slice %60 {offsets = [80, 0], sizes = [8, 128], strides = [1, 1]} : vector<128x128xf32> to vector<8x128xf32>
        %75 = arith.addf %64, %74 : vector<8x128xf32>
        %76 = vector.extract_strided_slice %60 {offsets = [88, 0], sizes = [8, 128], strides = [1, 1]} : vector<128x128xf32> to vector<8x128xf32>
        %77 = arith.addf %65, %76 : vector<8x128xf32>
        %78 = vector.extract_strided_slice %60 {offsets = [96, 0], sizes = [8, 128], strides = [1, 1]} : vector<128x128xf32> to vector<8x128xf32>
        %79 = arith.addf %66, %78 : vector<8x128xf32>
        %80 = vector.extract_strided_slice %60 {offsets = [104, 0], sizes = [8, 128], strides = [1, 1]} : vector<128x128xf32> to vector<8x128xf32>
        %81 = arith.addf %67, %80 : vector<8x128xf32>
        %82 = vector.extract_strided_slice %60 {offsets = [112, 0], sizes = [8, 128], strides = [1, 1]} : vector<128x128xf32> to vector<8x128xf32>
        %83 = arith.addf %68, %82 : vector<8x128xf32>
        %84 = vector.extract_strided_slice %60 {offsets = [120, 0], sizes = [8, 128], strides = [1, 1]} : vector<128x128xf32> to vector<8x128xf32>
        %85 = arith.addf %69, %84 : vector<8x128xf32>
        %86 = arith.addf %71, %73 : vector<8x128xf32>
        %87 = arith.addf %86, %75 : vector<8x128xf32>
        %88 = arith.addf %87, %77 : vector<8x128xf32>
        %89 = arith.addf %88, %79 : vector<8x128xf32>
        %90 = arith.addf %89, %81 : vector<8x128xf32>
        %91 = arith.addf %90, %83 : vector<8x128xf32>
        %92 = arith.addf %91, %85 : vector<8x128xf32>
        %93 = vector.shape_cast %92 : vector<8x128xf32> to vector<1x1x8x128xf32>
        %94 = arith.addf %61, %93 : vector<1x1x8x128xf32>
        %c0_33 = arith.constant 0 : index
        %c0_34 = arith.constant 0 : index
        %c0_35 = arith.constant 0 : index
        %c0_36 = arith.constant 0 : index
        %95 = vector.load %arg11[%c0_33, %c0_34, %c0_35, %c0_36] : memref<1x1x8x128xf32, #tpu.memory_space<vmem>>, vector<1x1x8x128xf32>
        tpu.vector_store %arg11[%c0_33, %c0_34, %c0_35, %c0_36], %94 {strides = array<i32>} : memref<1x1x8x128xf32, #tpu.memory_space<vmem>>, vector<1x1x8x128xf32>,
        %c0_37 = arith.constant 0 : index
        %c0_38 = arith.constant 0 : index
        %c0_39 = arith.constant 0 : index
        %c0_40 = arith.constant 0 : index
        %96 = vector.load %arg12[%c0_37, %c0_38, %c0_39, %c0_40] : memref<1x1x8x128xf32, #tpu.memory_space<vmem>>, vector<1x1x8x128xf32>
        %97 = vector.extract_strided_slice %43 {offsets = [0, 0], sizes = [8, 128], strides = [1, 1]} : vector<128x128xf32> to vector<8x128xf32>
        %98 = vector.extract_strided_slice %43 {offsets = [8, 0], sizes = [8, 128], strides = [1, 1]} : vector<128x128xf32> to vector<8x128xf32>
        %99 = vector.extract_strided_slice %43 {offsets = [16, 0], sizes = [8, 128], strides = [1, 1]} : vector<128x128xf32> to vector<8x128xf32>
        %100 = vector.extract_strided_slice %43 {offsets = [24, 0], sizes = [8, 128], strides = [1, 1]} : vector<128x128xf32> to vector<8x128xf32>
        %101 = vector.extract_strided_slice %43 {offsets = [32, 0], sizes = [8, 128], strides = [1, 1]} : vector<128x128xf32> to vector<8x128xf32>
        %102 = vector.extract_strided_slice %43 {offsets = [40, 0], sizes = [8, 128], strides = [1, 1]} : vector<128x128xf32> to vector<8x128xf32>
        %103 = vector.extract_strided_slice %43 {offsets = [48, 0], sizes = [8, 128], strides = [1, 1]} : vector<128x128xf32> to vector<8x128xf32>
        %104 = vector.extract_strided_slice %43 {offsets = [56, 0], sizes = [8, 128], strides = [1, 1]} : vector<128x128xf32> to vector<8x128xf32>
        %105 = vector.extract_strided_slice %43 {offsets = [64, 0], sizes = [8, 128], strides = [1, 1]} : vector<128x128xf32> to vector<8x128xf32>
        %106 = arith.addf %97, %105 : vector<8x128xf32>
        %107 = vector.extract_strided_slice %43 {offsets = [72, 0], sizes = [8, 128], strides = [1, 1]} : vector<128x128xf32> to vector<8x128xf32>
        %108 = arith.addf %98, %107 : vector<8x128xf32>
        %109 = vector.extract_strided_slice %43 {offsets = [80, 0], sizes = [8, 128], strides = [1, 1]} : vector<128x128xf32> to vector<8x128xf32>
        %110 = arith.addf %99, %109 : vector<8x128xf32>
        %111 = vector.extract_strided_slice %43 {offsets = [88, 0], sizes = [8, 128], strides = [1, 1]} : vector<128x128xf32> to vector<8x128xf32>
        %112 = arith.addf %100, %111 : vector<8x128xf32>
        %113 = vector.extract_strided_slice %43 {offsets = [96, 0], sizes = [8, 128], strides = [1, 1]} : vector<128x128xf32> to vector<8x128xf32>
        %114 = arith.addf %101, %113 : vector<8x128xf32>
        %115 = vector.extract_strided_slice %43 {offsets = [104, 0], sizes = [8, 128], strides = [1, 1]} : vector<128x128xf32> to vector<8x128xf32>
        %116 = arith.addf %102, %115 : vector<8x128xf32>
        %117 = vector.extract_strided_slice %43 {offsets = [112, 0], sizes = [8, 128], strides = [1, 1]} : vector<128x128xf32> to vector<8x128xf32>
        %118 = arith.addf %103, %117 : vector<8x128xf32>
        %119 = vector.extract_strided_slice %43 {offsets = [120, 0], sizes = [8, 128], strides = [1, 1]} : vector<128x128xf32> to vector<8x128xf32>
        %120 = arith.addf %104, %119 : vector<8x128xf32>
        %121 = arith.addf %106, %108 : vector<8x128xf32>
        %122 = arith.addf %121, %110 : vector<8x128xf32>
        %123 = arith.addf %122, %112 : vector<8x128xf32>
        %124 = arith.addf %123, %114 : vector<8x128xf32>
        %125 = arith.addf %124, %116 : vector<8x128xf32>
        %126 = arith.addf %125, %118 : vector<8x128xf32>
        %127 = arith.addf %126, %120 : vector<8x128xf32>
        %128 = vector.shape_cast %127 : vector<8x128xf32> to vector<1x1x8x128xf32>
        %129 = arith.addf %96, %128 : vector<1x1x8x128xf32>
        %c0_41 = arith.constant 0 : index
        %c0_42 = arith.constant 0 : index
        %c0_43 = arith.constant 0 : index
        %c0_44 = arith.constant 0 : index
        %130 = vector.load %arg12[%c0_41, %c0_42, %c0_43, %c0_44] : memref<1x1x8x128xf32, #tpu.memory_space<vmem>>, vector<1x1x8x128xf32>
        tpu.vector_store %arg12[%c0_41, %c0_42, %c0_43, %c0_44], %129 {strides = array<i32>} : memref<1x1x8x128xf32, #tpu.memory_space<vmem>>, vector<1x1x8x128xf32>,
      } else {
      }
    } else {
    }
    %c0_9 = arith.constant 0 : index
    %c0_10 = arith.constant 0 : index
    %20 = vector.load %arg3[%c0_9, %c0_10] : memref<16x128xbf16, #tpu.memory_space<vmem>>, vector<16x128xbf16>
    %21 = arith.truncf %16 : vector<128x128xf32> to vector<128x128xbf16>
    %cst_11 = arith.constant dense<0.000000e+00> : vector<16x128xf32>
    %22 = tpu.matmul %20, %21, %cst_11 {dimension_numbers = #tpu.dot_dimension_numbers<[1], [1], [0], [0], [0, 0, 1, 0], [], []>} : vector<16x128xbf16>, vector<128x128xbf16>, vector<16x128xf32> -> vector<16x128xf32>
    %c0_12 = arith.constant 0 : index
    %c0_13 = arith.constant 0 : index
    %23 = vector.load %arg10[%c0_12, %c0_13] : memref<16x128xf32, #tpu.memory_space<vmem>>, vector<16x128xf32>
    %24 = arith.addf %23, %22 : vector<16x128xf32>
    %c0_14 = arith.constant 0 : index
    %c0_15 = arith.constant 0 : index
    %25 = vector.load %arg10[%c0_14, %c0_15] : memref<16x128xf32, #tpu.memory_space<vmem>>, vector<16x128xf32>
    tpu.vector_store %arg10[%c0_14, %c0_15], %24 {strides = array<i32>} : memref<16x128xf32, #tpu.memory_space<vmem>>, vector<16x128xf32>,
    %c0_i32_16 = arith.constant 0 : i32
    %26 = arith.cmpi eq, %arg2, %c0_i32_16 : i32
    %27 = arith.extui %26 : i1 to i32
    %c0_i32_17 = arith.constant 0 : i32
    %28 = arith.cmpi ne, %27, %c0_i32_17 : i32
    scf.if %28 {
      %c0_18 = arith.constant 0 : index
      %c0_19 = arith.constant 0 : index
      %29 = vector.load %arg7[%c0_18, %c0_19] : memref<1x128xf32, #tpu.memory_space<vmem>>, vector<1x128xf32>
      %c0_20 = arith.constant 0 : index
      %c0_21 = arith.constant 0 : index
      %30 = vector.load %arg8[%c0_20, %c0_21] : memref<1x128xf32, #tpu.memory_space<vmem>>, vector<1x128xf32>
      %c0_22 = arith.constant 0 : index
      %c0_23 = arith.constant 0 : index
      %31 = vector.load %arg9[%c0_22, %c0_23] : memref<1x128xf32, #tpu.memory_space<vmem>>, vector<1x128xf32>
      %cst_24 = arith.constant 0.000000e+00 : f32
      %32 = vector.broadcast %cst_24 : f32 to vector<1x128xf32>
      %33 = arith.maximumf %30, %32 : vector<1x128xf32>
      %34 = math.absf %30 : vector<1x128xf32>
      %cst_25 = arith.constant 0.000000e+00 : f32
      %35 = vector.broadcast %cst_25 : f32 to vector<1x128xf32>
      %36 = arith.subf %35, %34 : vector<1x128xf32>
      %37 = math.exp %36 : vector<1x128xf32>
      %38 = math.log1p %37 : vector<1x128xf32>
      %39 = arith.addf %33, %38 : vector<1x128xf32>
      %40 = arith.mulf %39, %31 : vector<1x128xf32>
      %41 = arith.addf %29, %40 : vector<1x128xf32>
      %c0_26 = arith.constant 0 : index
      %c0_27 = arith.constant 0 : index
      %42 = vector.load %arg10[%c0_26, %c0_27] : memref<16x128xf32, #tpu.memory_space<vmem>>, vector<16x128xf32>
      %43 = vector.broadcast %41 : vector<1x128xf32> to vector<16x128xf32>
      %44 = arith.addf %42, %43 : vector<16x128xf32>
      %c0_28 = arith.constant 0 : index
      %c0_29 = arith.constant 0 : index
      %45 = vector.load %arg10[%c0_28, %c0_29] : memref<16x128xf32, #tpu.memory_space<vmem>>, vector<16x128xf32>
      tpu.vector_store %arg10[%c0_28, %c0_29], %44 {strides = array<i32>} : memref<16x128xf32, #tpu.memory_space<vmem>>, vector<16x128xf32>,
      %c0_i32_30 = arith.constant 0 : i32
      %46 = arith.cmpi eq, %arg0, %c0_i32_30 : i32
      %47 = arith.extui %46 : i1 to i32
      %c0_i32_31 = arith.constant 0 : i32
      %48 = arith.cmpi ne, %47, %c0_i32_31 : i32
      scf.if %48 {
        %49 = math.log %39 : vector<1x128xf32>
        %cst_32 = arith.constant -0.918938517 : f32
        %50 = vector.broadcast %cst_32 : f32 to vector<1x128xf32>
        %51 = arith.subf %50, %49 : vector<1x128xf32>
        %52 = arith.mulf %31, %31 : vector<1x128xf32>
        %cst_33 = arith.constant 5.000000e-01 : f32
        %53 = vector.broadcast %cst_33 : f32 to vector<1x128xf32>
        %54 = arith.mulf %53, %52 : vector<1x128xf32>
        %55 = arith.subf %51, %54 : vector<1x128xf32>
        %56 = arith.mulf %41, %41 : vector<1x128xf32>
        %cst_34 = arith.constant 5.000000e-01 : f32
        %57 = vector.broadcast %cst_34 : f32 to vector<1x128xf32>
        %58 = arith.mulf %56, %57 : vector<1x128xf32>
        %cst_35 = arith.constant -1.6120857 : f32
        %59 = vector.broadcast %cst_35 : f32 to vector<1x128xf32>
        %60 = arith.subf %59, %58 : vector<1x128xf32>
        %cst_36 = arith.constant 81377.3984 : f32
        %61 = vector.broadcast %cst_36 : f32 to vector<1x128xf32>
        %62 = arith.mulf %56, %61 : vector<1x128xf32>
        %cst_37 = arith.constant 4.38791418 : f32
        %63 = vector.broadcast %cst_37 : f32 to vector<1x128xf32>
        %64 = arith.subf %63, %62 : vector<1x128xf32>
        %65 = arith.maximumf %60, %64 : vector<1x128xf32>
        %66 = arith.subf %60, %64 : vector<1x128xf32>
        %67 = math.absf %66 : vector<1x128xf32>
        %cst_38 = arith.constant 0.000000e+00 : f32
        %68 = vector.broadcast %cst_38 : f32 to vector<1x128xf32>
        %69 = arith.subf %68, %67 : vector<1x128xf32>
        %70 = math.exp %69 : vector<1x128xf32>
        %71 = math.log1p %70 : vector<1x128xf32>
        %72 = arith.addf %65, %71 : vector<1x128xf32>
        %c128_i32 = arith.constant 128 : i32
        %73 = arith.muli %arg1, %c128_i32 : i32
        %74 = tpu.iota {dimensions = array<i32: 1>} : vector<1x128xi32>
        %75 = vector.broadcast %73 : i32 to vector<1x128xi32>
        %76 = arith.addi %75, %74 : vector<1x128xi32>
        %c16_i32 = arith.constant 16 : i32
        %77 = vector.broadcast %c16_i32 : i32 to vector<1x128xi32>
        %78 = arith.cmpi slt, %76, %77 : vector<1x128xi32>
        %cst_39 = arith.constant 0.000000e+00 : f32
        %79 = vector.broadcast %cst_39 : f32 to vector<1x128xf32>
        %80 = arith.select %78, %55, %79 : vector<1x128xi1>, vector<1x128xf32>
        %cst_40 = arith.constant 0.000000e+00 : f32
        %81 = vector.broadcast %cst_40 : f32 to vector<1x128xf32>
        %82 = arith.select %78, %72, %81 : vector<1x128xi1>, vector<1x128xf32>
        %c0_41 = arith.constant 0 : index
        %c0_42 = arith.constant 0 : index
        %c0_43 = arith.constant 0 : index
        %c0_44 = arith.constant 0 : index
        %83 = vector.load %arg11[%c0_41, %c0_42, %c0_43, %c0_44] : memref<1x1x8x128xf32, #tpu.memory_space<vmem>>, vector<1x1x1x128xf32>
        %84 = vector.shape_cast %82 : vector<1x128xf32> to vector<1x1x1x128xf32>
        %85 = arith.addf %83, %84 : vector<1x1x1x128xf32>
        %c0_45 = arith.constant 0 : index
        %c0_46 = arith.constant 0 : index
        %c0_47 = arith.constant 0 : index
        %c0_48 = arith.constant 0 : index
        %86 = vector.load %arg11[%c0_45, %c0_46, %c0_47, %c0_48] : memref<1x1x8x128xf32, #tpu.memory_space<vmem>>, vector<1x1x1x128xf32>
        tpu.vector_store %arg11[%c0_45, %c0_46, %c0_47, %c0_48], %85 {strides = array<i32>} : memref<1x1x8x128xf32, #tpu.memory_space<vmem>>, vector<1x1x1x128xf32>,
        %c0_49 = arith.constant 0 : index
        %c0_50 = arith.constant 0 : index
        %c0_51 = arith.constant 0 : index
        %c0_52 = arith.constant 0 : index
        %87 = vector.load %arg12[%c0_49, %c0_50, %c0_51, %c0_52] : memref<1x1x8x128xf32, #tpu.memory_space<vmem>>, vector<1x1x1x128xf32>
        %88 = vector.shape_cast %80 : vector<1x128xf32> to vector<1x1x1x128xf32>
        %89 = arith.addf %87, %88 : vector<1x1x1x128xf32>
        %c0_53 = arith.constant 0 : index
        %c0_54 = arith.constant 0 : index
        %c0_55 = arith.constant 0 : index
        %c0_56 = arith.constant 0 : index
        %90 = vector.load %arg12[%c0_53, %c0_54, %c0_55, %c0_56] : memref<1x1x8x128xf32, #tpu.memory_space<vmem>>, vector<1x1x1x128xf32>
        tpu.vector_store %arg12[%c0_53, %c0_54, %c0_55, %c0_56], %89 {strides = array<i32>} : memref<1x1x8x128xf32, #tpu.memory_space<vmem>>, vector<1x1x1x128xf32>,
      } else {
      }
    } else {
    }
    return
  }
  func.func @transform_0(%arg0: i32, %arg1: i32, %arg2: i32) -> (i32, i32) {
    %c0_i32 = arith.constant 0 : i32
    return %arg0, %arg2 : i32, i32
  }
  func.func @transform_1(%arg0: i32, %arg1: i32, %arg2: i32) -> (i32, i32) {
    %c0_i32 = arith.constant 0 : i32
    return %arg1, %arg2 : i32, i32
  }
  func.func @transform_2(%arg0: i32, %arg1: i32, %arg2: i32) -> (i32, i32) {
    %c0_i32 = arith.constant 0 : i32
    return %arg1, %arg2 : i32, i32
  }
  func.func @transform_3(%arg0: i32, %arg1: i32, %arg2: i32) -> (i32, i32) {
    %c0_i32 = arith.constant 0 : i32
    return %arg1, %arg2 : i32, i32
  }
  func.func @transform_4(%arg0: i32, %arg1: i32, %arg2: i32) -> (i32, i32) {
    %c0_i32 = arith.constant 0 : i32
    %c0_i32_0 = arith.constant 0 : i32
    return %c0_i32, %arg1 : i32, i32
  }
  func.func @transform_5(%arg0: i32, %arg1: i32, %arg2: i32) -> (i32, i32) {
    %c0_i32 = arith.constant 0 : i32
    %c0_i32_0 = arith.constant 0 : i32
    return %c0_i32, %arg1 : i32, i32
  }
  func.func @transform_6(%arg0: i32, %arg1: i32, %arg2: i32) -> (i32, i32) {
    %c0_i32 = arith.constant 0 : i32
    %c0_i32_0 = arith.constant 0 : i32
    return %c0_i32, %arg1 : i32, i32
  }
  func.func @transform_7(%arg0: i32, %arg1: i32, %arg2: i32) -> (i32, i32) {
    %c0_i32 = arith.constant 0 : i32
    return %arg0, %arg1 : i32, i32
  }
  func.func @transform_8(%arg0: i32, %arg1: i32, %arg2: i32) -> (i32, i32, i32, i32) {
    %c0_i32 = arith.constant 0 : i32
    %c0_i32_0 = arith.constant 0 : i32
    %c0_i32_1 = arith.constant 0 : i32
    return %arg0, %arg1, %c0_i32, %c0_i32_0 : i32, i32, i32, i32
  }
  func.func @transform_9(%arg0: i32, %arg1: i32, %arg2: i32) -> (i32, i32, i32, i32) {
    %c0_i32 = arith.constant 0 : i32
    %c0_i32_0 = arith.constant 0 : i32
    %c0_i32_1 = arith.constant 0 : i32
    return %arg0, %arg1, %c0_i32, %c0_i32_0 : i32, i32, i32, i32
  }
}

</mosaic_0001>

<llo_original>
// kernel: bayesian_linear_forward.1
$region0: #{bayesian_linear_forward.1}
  #allocation0 [shape = 'u32[]', space=smem, size = 0x4, offset = 0x4, fixed_abs, tag = 'smem constant byte address 0x4 - core index']
  #allocation1 [shape = 'u32[144,128]{1,0:T(1,128)}', space=vmem, size = 0x12000, scoped, tag = 'internal scratch']
  %s0 = inlined_call_operand.vmem [shape: bf16[16,128], index: 0, kind: input, shape index: {}]
  %s1 = inlined_call_operand.vmem [shape: f32[128,128], index: 1, kind: input, shape index: {}]
  %s2 = inlined_call_operand.vmem [shape: f32[128,128], index: 2, kind: input, shape index: {}]
  %s3 = inlined_call_operand.vmem [shape: bf16[128,128], index: 3, kind: input, shape index: {}]
  %s4 = inlined_call_operand.vmem [shape: f32[1,128], index: 4, kind: input, shape index: {}]
  %s5 = inlined_call_operand.vmem [shape: f32[1,128], index: 5, kind: input, shape index: {}]
  %s6 = inlined_call_operand.vmem [shape: f32[1,128], index: 6, kind: input, shape index: {}]
  %s7 = inlined_call_operand.vmem [shape: f32[16,128], index: 7, kind: output, shape index: {0}]
  %s8 = inlined_call_operand.vmem [shape: f32[1,1,8,128], index: 8, kind: output, shape index: {1}]
  %s9 = inlined_call_operand.vmem [shape: f32[1,1,8,128], index: 9, kind: output, shape index: {2}]
  %10 = xla_tuple %s7, %s8, %s9
  %s11 = sld [smem:[#allocation0]]
  $region78: #{bayesian_linear_forward.1} parent=0
    _
  %s13 = ssub.s32 1, %s11
  %s14 = scalar_select 0, %s13, %s11
  // Predicated region
  $region2: #{bayesian_linear_forward.1} parent=0 // pred_check
    _
  $region3: #{bayesian_linear_forward.1} parent=0 // pred_check_branch
    %16 = sbr.rel (0) target = $region5
  $region4: #{bayesian_linear_forward.1} parent=0 // pred_region
    _
  $region5: #{bayesian_linear_forward.1} parent=0 // pred_fallthru
    _
  // Predicated region
  $region6: #{bayesian_linear_forward.1} parent=0 // pred_check
    _
  $region7: #{bayesian_linear_forward.1} parent=0 // pred_check_branch
    %18 = sbr.rel (0) target = $region9
  $region8: #{bayesian_linear_forward.1} parent=0 // pred_region
    _
  $region9: #{bayesian_linear_forward.1} parent=0 // pred_fallthru
    _
  // Predicated region
  $region10: #{bayesian_linear_forward.1} parent=0 // pred_check
    _
  $region11: #{bayesian_linear_forward.1} parent=0 // pred_check_branch
    %20 = sbr.rel (0) target = $region13
  $region12: #{bayesian_linear_forward.1} parent=0 // pred_region
    _
  $region13: #{bayesian_linear_forward.1} parent=0 // pred_fallthru
    _
  // Predicated region
  $region14: #{bayesian_linear_forward.1} parent=0 // pred_check
    _
  $region15: #{bayesian_linear_forward.1} parent=0 // pred_check_branch
    %22 = sbr.rel (0) target = $region17
  $region16: #{bayesian_linear_forward.1} parent=0 // pred_region
    _
  $region17: #{bayesian_linear_forward.1} parent=0 // pred_fallthru
    _
  // Predicated region
  $region18: #{bayesian_linear_forward.1} parent=0 // pred_check
    _
  $region19: #{bayesian_linear_forward.1} parent=0 // pred_check_branch
    %24 = sbr.rel (0) target = $region21
  $region20: #{bayesian_linear_forward.1} parent=0 // pred_region
    _
  $region21: #{bayesian_linear_forward.1} parent=0 // pred_fallthru
    _
  // Predicated region
  $region22: #{bayesian_linear_forward.1} parent=0 // pred_check
    _
  $region23: #{bayesian_linear_forward.1} parent=0 // pred_check_branch
    %26 = sbr.rel (0) target = $region25
  $region24: #{bayesian_linear_forward.1} parent=0 // pred_region
    _
  $region25: #{bayesian_linear_forward.1} parent=0 // pred_fallthru
    _
  // Predicated region
  $region26: #{bayesian_linear_forward.1} parent=0 // pred_check
    _
  $region27: #{bayesian_linear_forward.1} parent=0 // pred_check_branch
    %28 = sbr.rel (0) target = $region29
  $region28: #{bayesian_linear_forward.1} parent=0 // pred_region
    _
  $region29: #{bayesian_linear_forward.1} parent=0 // pred_fallthru
    _
  %p30 = scmp.eq.s32.totalorder 0, 0
  // Predicated region
  $region30: #{bayesian_linear_forward.1} parent=0 // pred_check
    %p31 = pneg %p30
  $region31: #{bayesian_linear_forward.1} parent=0 // pred_check_branch
    %33 = sbr.rel (%p31) target = $region33
  $region32: #{bayesian_linear_forward.1} parent=0 // pred_region
    %34 = vst [vmem:[%s7] sm:$0xff] 0.0
    %35 = vst [vmem:[%s7 + $0x8] sm:$0xff] 0.0
    %36 = vst [vmem:[%s8] sm:$0xff] 0.0
    %37 = vst [vmem:[%s9] sm:$0xff] 0.0
  $region33: #{bayesian_linear_forward.1} parent=0 // pred_fallthru
    _
  %v38 = vld [vmem:[%s1] sm:$0xff]
  %v39 = vld [vmem:[%s1 + $0x8] sm:$0xff]
  %v40 = vld [vmem:[%s1 + $0x10] sm:$0xff]
  %v41 = vld [vmem:[%s1 + $0x18] sm:$0xff]
  %v42 = vld [vmem:[%s1 + $0x20] sm:$0xff]
  %v43 = vld [vmem:[%s1 + $0x28] sm:$0xff]
  %v44 = vld [vmem:[%s1 + $0x30] sm:$0xff]
  %v45 = vld [vmem:[%s1 + $0x38] sm:$0xff]
  %v46 = vld [vmem:[%s1 + $0x40] sm:$0xff]
  %v47 = vld [vmem:[%s1 + $0x48] sm:$0xff]
  %v48 = vld [vmem:[%s1 + $0x50] sm:$0xff]
  %v49 = vld [vmem:[%s1 + $0x58] sm:$0xff]
  %v50 = vld [vmem:[%s1 + $0x60] sm:$0xff]
  %v51 = vld [vmem:[%s1 + $0x68] sm:$0xff]
  %v52 = vld [vmem:[%s1 + $0x70] sm:$0xff]
  %v53 = vld [vmem:[%s1 + $0x78] sm:$0xff]
  %v54 = vld [vmem:[%s2] sm:$0xff]
  %v55 = vld [vmem:[%s2 + $0x8] sm:$0xff]
  %v56 = vld [vmem:[%s2 + $0x10] sm:$0xff]
  %v57 = vld [vmem:[%s2 + $0x18] sm:$0xff]
  %v58 = vld [vmem:[%s2 + $0x20] sm:$0xff]
  %v59 = vld [vmem:[%s2 + $0x28] sm:$0xff]
  %v60 = vld [vmem:[%s2 + $0x30] sm:$0xff]
  %v61 = vld [vmem:[%s2 + $0x38] sm:$0xff]
  %v62 = vld [vmem:[%s2 + $0x40] sm:$0xff]
  %v63 = vld [vmem:[%s2 + $0x48] sm:$0xff]
  %v64 = vld [vmem:[%s2 + $0x50] sm:$0xff]
  %v65 = vld [vmem:[%s2 + $0x58] sm:$0xff]
  %v66 = vld [vmem:[%s2 + $0x60] sm:$0xff]
  %v67 = vld [vmem:[%s2 + $0x68] sm:$0xff]
  %v68 = vld [vmem:[%s2 + $0x70] sm:$0xff]
  %v69 = vld [vmem:[%s2 + $0x78] sm:$0xff]
  %v70 = vld [vmem:[%s3] sm:$0xf]
  %v71 = vld [vmem:[%s3 + $0x4] sm:$0xf]
  %v72 = vld [vmem:[%s3 + $0x8] sm:$0xf]
  %v73 = vld [vmem:[%s3 + $0xc] sm:$0xf]
  %v74 = vld [vmem:[%s3 + $0x10] sm:$0xf]
  %v75 = vld [vmem:[%s3 + $0x14] sm:$0xf]
  %v76 = vld [vmem:[%s3 + $0x18] sm:$0xf]
  %v77 = vld [vmem:[%s3 + $0x1c] sm:$0xf]
  %v78 = vld [vmem:[%s3 + $0x20] sm:$0xf]
  %v79 = vld [vmem:[%s3 + $0x24] sm:$0xf]
  %v80 = vld [vmem:[%s3 + $0x28] sm:$0xf]
  %v81 = vld [vmem:[%s3 + $0x2c] sm:$0xf]
  %v82 = vld [vmem:[%s3 + $0x30] sm:$0xf]
  %v83 = vld [vmem:[%s3 + $0x34] sm:$0xf]
  %v84 = vld [vmem:[%s3 + $0x38] sm:$0xf]
  %v85 = vld [vmem:[%s3 + $0x3c] sm:$0xf]
  %v86 = vunpack.c.l.bf16 %v70
  %v87 = vunpack.c.l.bf16 %v71
  %v88 = vunpack.c.l.bf16 %v72
  %v89 = vunpack.c.l.bf16 %v73
  %v90 = vunpack.c.l.bf16 %v74
  %v91 = vunpack.c.l.bf16 %v75
  %v92 = vunpack.c.l.bf16 %v76
  %v93 = vunpack.c.l.bf16 %v77
  %v94 = vunpack.c.l.bf16 %v78
  %v95 = vunpack.c.l.bf16 %v79
  %v96 = vunpack.c.l.bf16 %v80
  %v97 = vunpack.c.l.bf16 %v81
  %v98 = vunpack.c.l.bf16 %v82
  %v99 = vunpack.c.l.bf16 %v83
  %v100 = vunpack.c.l.bf16 %v84
  %v101 = vunpack.c.l.bf16 %v85
  %v102 = vmax.f32 %v54, 0.0
  %v103 = vmax.f32 %v55, 0.0
  %v104 = vmax.f32 %v56, 0.0
  %v105 = vmax.f32 %v57, 0.0
  %v106 = vmax.f32 %v58, 0.0
  %v107 = vmax.f32 %v59, 0.0
  %v108 = vmax.f32 %v60, 0.0
  %v109 = vmax.f32 %v61, 0.0
  %v110 = vmax.f32 %v62, 0.0
  %v111 = vmax.f32 %v63, 0.0
  %v112 = vmax.f32 %v64, 0.0
  %v113 = vmax.f32 %v65, 0.0
  %v114 = vmax.f32 %v66, 0.0
  %v115 = vmax.f32 %v67, 0.0
  %v116 = vmax.f32 %v68, 0.0
  %v117 = vmax.f32 %v69, 0.0
  %v118 = vand.u32 2147483647, %v54
  %v119 = vand.u32 2147483647, %v55
  %v120 = vand.u32 2147483647, %v56
  %v121 = vand.u32 2147483647, %v57
  %v122 = vand.u32 2147483647, %v58
  %v123 = vand.u32 2147483647, %v59
  %v124 = vand.u32 2147483647, %v60
  %v125 = vand.u32 2147483647, %v61
  %v126 = vand.u32 2147483647, %v62
  %v127 = vand.u32 2147483647, %v63
  %v128 = vand.u32 2147483647, %v64
  %v129 = vand.u32 2147483647, %v65
  %v130 = vand.u32 2147483647, %v66
  %v131 = vand.u32 2147483647, %v67
  %v132 = vand.u32 2147483647, %v68
  %v133 = vand.u32 2147483647, %v69
  %v134 = vsub.f32 0.0, %v118
  %v135 = vsub.f32 0.0, %v119
  %v136 = vsub.f32 0.0, %v120
  %v137 = vsub.f32 0.0, %v121
  %v138 = vsub.f32 0.0, %v122
  %v139 = vsub.f32 0.0, %v123
  %v140 = vsub.f32 0.0, %v124
  %v141 = vsub.f32 0.0, %v125
  %v142 = vsub.f32 0.0, %v126
  %v143 = vsub.f32 0.0, %v127
  %v144 = vsub.f32 0.0, %v128
  %v145 = vsub.f32 0.0, %v129
  %v146 = vsub.f32 0.0, %v130
  %v147 = vsub.f32 0.0, %v131
  %v148 = vsub.f32 0.0, %v132
  %v149 = vsub.f32 0.0, %v133
  %v150 = vmul.f32 %v134, 1.442695
  %v151 = vpow.pop %v150
  %v152 = vmul.f32 %v135, 1.442695
  %v153 = vpow.pop %v152
  %v154 = vmul.f32 %v136, 1.442695
  %v155 = vpow.pop %v154
  %v156 = vmul.f32 %v137, 1.442695
  %v157 = vpow.pop %v156
  %v158 = vmul.f32 %v138, 1.442695
  %v159 = vpow.pop %v158
  %v160 = vmul.f32 %v139, 1.442695
  %v161 = vpow.pop %v160
  %v162 = vmul.f32 %v140, 1.442695
  %v163 = vpow.pop %v162
  %v164 = vmul.f32 %v141, 1.442695
  %v165 = vpow.pop %v164
  %v166 = vmul.f32 %v142, 1.442695
  %v167 = vpow.pop %v166
  %v168 = vmul.f32 %v143, 1.442695
  %v169 = vpow.pop %v168
  %v170 = vmul.f32 %v144, 1.442695
  %v171 = vpow.pop %v170
  %v172 = vmul.f32 %v145, 1.442695
  %v173 = vpow.pop %v172
  %v174 = vmul.f32 %v146, 1.442695
  %v175 = vpow.pop %v174
  %v176 = vmul.f32 %v147, 1.442695
  %v177 = vpow.pop %v176
  %v178 = vmul.f32 %v148, 1.442695
  %v179 = vpow.pop %v178
  %v180 = vmul.f32 %v149, 1.442695
  %v181 = vpow.pop %v180
  %v182 = vadd.f32 %v151, 1.0
  %v183 = vlog2.pop %v182
  %v184 = vmul.f32 %v183, 0.6931472
  %v185 = vmul.f32 -0.5, %v151
  %v186 = vadd.f32 %v185, 1.0
  %v187 = vmul.f32 %v186, %v151
  %v188 = vand.u32 2147483647, %v151
  %vm189 = vcmp.lt.f32.partialorder %v188, 0.0004427343
  %v190 = vsel %vm189, %v187, %v184
  %v191 = vadd.f32 %v153, 1.0
  %v192 = vlog2.pop %v191
  %v193 = vmul.f32 %v192, 0.6931472
  %v194 = vmul.f32 -0.5, %v153
  %v195 = vadd.f32 %v194, 1.0
  %v196 = vmul.f32 %v195, %v153
  %v197 = vand.u32 2147483647, %v153
  %vm198 = vcmp.lt.f32.partialorder %v197, 0.0004427343
  %v199 = vsel %vm198, %v196, %v193
  %v200 = vadd.f32 %v155, 1.0
  %v201 = vlog2.pop %v200
  %v202 = vmul.f32 %v201, 0.6931472
  %v203 = vmul.f32 -0.5, %v155
  %v204 = vadd.f32 %v203, 1.0
  %v205 = vmul.f32 %v204, %v155
  %v206 = vand.u32 2147483647, %v155
  %vm207 = vcmp.lt.f32.partialorder %v206, 0.0004427343
  %v208 = vsel %vm207, %v205, %v202
  %v209 = vadd.f32 %v157, 1.0
  %v210 = vlog2.pop %v209
  %v211 = vmul.f32 %v210, 0.6931472
  %v212 = vmul.f32 -0.5, %v157
  %v213 = vadd.f32 %v212, 1.0
  %v214 = vmul.f32 %v213, %v157
  %v215 = vand.u32 2147483647, %v157
  %vm216 = vcmp.lt.f32.partialorder %v215, 0.0004427343
  %v217 = vsel %vm216, %v214, %v211
  %v218 = vadd.f32 %v159, 1.0
  %v219 = vlog2.pop %v218
  %v220 = vmul.f32 %v219, 0.6931472
  %v221 = vmul.f32 -0.5, %v159
  %v222 = vadd.f32 %v221, 1.0
  %v223 = vmul.f32 %v222, %v159
  %v224 = vand.u32 2147483647, %v159
  %vm225 = vcmp.lt.f32.partialorder %v224, 0.0004427343
  %v226 = vsel %vm225, %v223, %v220
  %v227 = vadd.f32 %v161, 1.0
  %v228 = vlog2.pop %v227
  %v229 = vmul.f32 %v228, 0.6931472
  %v230 = vmul.f32 -0.5, %v161
  %v231 = vadd.f32 %v230, 1.0
  %v232 = vmul.f32 %v231, %v161
  %v233 = vand.u32 2147483647, %v161
  %vm234 = vcmp.lt.f32.partialorder %v233, 0.0004427343
  %v235 = vsel %vm234, %v232, %v229
  %v236 = vadd.f32 %v163, 1.0
  %v237 = vlog2.pop %v236
  %v238 = vmul.f32 %v237, 0.6931472
  %v239 = vmul.f32 -0.5, %v163
  %v240 = vadd.f32 %v239, 1.0
  %v241 = vmul.f32 %v240, %v163
  %v242 = vand.u32 2147483647, %v163
  %vm243 = vcmp.lt.f32.partialorder %v242, 0.0004427343
  %v244 = vsel %vm243, %v241, %v238
  %v245 = vadd.f32 %v165, 1.0
  %v246 = vlog2.pop %v245
  %v247 = vmul.f32 %v246, 0.6931472
  %v248 = vmul.f32 -0.5, %v165
  %v249 = vadd.f32 %v248, 1.0
  %v250 = vmul.f32 %v249, %v165
  %v251 = vand.u32 2147483647, %v165
  %vm252 = vcmp.lt.f32.partialorder %v251, 0.0004427343
  %v253 = vsel %vm252, %v250, %v247
  %v254 = vadd.f32 %v167, 1.0
  %v255 = vlog2.pop %v254
  %v256 = vmul.f32 %v255, 0.6931472
  %v257 = vmul.f32 -0.5, %v167
  %v258 = vadd.f32 %v257, 1.0
  %v259 = vmul.f32 %v258, %v167
  %v260 = vand.u32 2147483647, %v167
  %vm261 = vcmp.lt.f32.partialorder %v260, 0.0004427343
  %v262 = vsel %vm261, %v259, %v256
  %v263 = vadd.f32 %v169, 1.0
  %v264 = vlog2.pop %v263
  %v265 = vmul.f32 %v264, 0.6931472
  %v266 = vmul.f32 -0.5, %v169
  %v267 = vadd.f32 %v266, 1.0
  %v268 = vmul.f32 %v267, %v169
  %v269 = vand.u32 2147483647, %v169
  %vm270 = vcmp.lt.f32.partialorder %v269, 0.0004427343
  %v271 = vsel %vm270, %v268, %v265
  %v272 = vadd.f32 %v171, 1.0
  %v273 = vlog2.pop %v272
  %v274 = vmul.f32 %v273, 0.6931472
  %v275 = vmul.f32 -0.5, %v171
  %v276 = vadd.f32 %v275, 1.0
  %v277 = vmul.f32 %v276, %v171
  %v278 = vand.u32 2147483647, %v171
  %vm279 = vcmp.lt.f32.partialorder %v278, 0.0004427343
  %v280 = vsel %vm279, %v277, %v274
  %v281 = vadd.f32 %v173, 1.0
  %v282 = vlog2.pop %v281
  %v283 = vmul.f32 %v282, 0.6931472
  %v284 = vmul.f32 -0.5, %v173
  %v285 = vadd.f32 %v284, 1.0
  %v286 = vmul.f32 %v285, %v173
  %v287 = vand.u32 2147483647, %v173
  %vm288 = vcmp.lt.f32.partialorder %v287, 0.0004427343
  %v289 = vsel %vm288, %v286, %v283
  %v290 = vadd.f32 %v175, 1.0
  %v291 = vlog2.pop %v290
  %v292 = vmul.f32 %v291, 0.6931472
  %v293 = vmul.f32 -0.5, %v175
  %v294 = vadd.f32 %v293, 1.0
  %v295 = vmul.f32 %v294, %v175
  %v296 = vand.u32 2147483647, %v175
  %vm297 = vcmp.lt.f32.partialorder %v296, 0.0004427343
  %v298 = vsel %vm297, %v295, %v292
  %v299 = vadd.f32 %v177, 1.0
  %v300 = vlog2.pop %v299
  %v301 = vmul.f32 %v300, 0.6931472
  %v302 = vmul.f32 -0.5, %v177
  %v303 = vadd.f32 %v302, 1.0
  %v304 = vmul.f32 %v303, %v177
  %v305 = vand.u32 2147483647, %v177
  %vm306 = vcmp.lt.f32.partialorder %v305, 0.0004427343
  %v307 = vsel %vm306, %v304, %v301
  %v308 = vadd.f32 %v179, 1.0
  %v309 = vlog2.pop %v308
  %v310 = vmul.f32 %v309, 0.6931472
  %v311 = vmul.f32 -0.5, %v179
  %v312 = vadd.f32 %v311, 1.0
  %v313 = vmul.f32 %v312, %v179
  %v314 = vand.u32 2147483647, %v179
  %vm315 = vcmp.lt.f32.partialorder %v314, 0.0004427343
  %v316 = vsel %vm315, %v313, %v310
  %v317 = vadd.f32 %v181, 1.0
  %v318 = vlog2.pop %v317
  %v319 = vmul.f32 %v318, 0.6931472
  %v320 = vmul.f32 -0.5, %v181
  %v321 = vadd.f32 %v320, 1.0
  %v322 = vmul.f32 %v321, %v181
  %v323 = vand.u32 2147483647, %v181
  %vm324 = vcmp.lt.f32.partialorder %v323, 0.0004427343
  %v325 = vsel %vm324, %v322, %v319
  %v326 = vadd.f32 %v102, %v190
  %v327 = vadd.f32 %v103, %v199
  %v328 = vadd.f32 %v104, %v208
  %v329 = vadd.f32 %v105, %v217
  %v330 = vadd.f32 %v106, %v226
  %v331 = vadd.f32 %v107, %v235
  %v332 = vadd.f32 %v108, %v244
  %v333 = vadd.f32 %v109, %v253
  %v334 = vadd.f32 %v110, %v262
  %v335 = vadd.f32 %v111, %v271
  %v336 = vadd.f32 %v112, %v280
  %v337 = vadd.f32 %v113, %v289
  %v338 = vadd.f32 %v114, %v298
  %v339 = vadd.f32 %v115, %v307
  %v340 = vadd.f32 %v116, %v316
  %v341 = vadd.f32 %v117, %v325
  %v342 = vmul.f32 %v326, %v86
  %v343 = vmul.f32 %v327, %v87
  %v344 = vmul.f32 %v328, %v88
  %v345 = vmul.f32 %v329, %v89
  %v346 = vmul.f32 %v330, %v90
  %v347 = vmul.f32 %v331, %v91
  %v348 = vmul.f32 %v332, %v92
  %v349 = vmul.f32 %v333, %v93
  %v350 = vmul.f32 %v334, %v94
  %v351 = vmul.f32 %v335, %v95
  %v352 = vmul.f32 %v336, %v96
  %v353 = vmul.f32 %v337, %v97
  %v354 = vmul.f32 %v338, %v98
  %v355 = vmul.f32 %v339, %v99
  %v356 = vmul.f32 %v340, %v100
  %v357 = vmul.f32 %v341, %v101
  %v358 = vadd.f32 %v38, %v342
  %v359 = vadd.f32 %v39, %v343
  %v360 = vadd.f32 %v40, %v344
  %v361 = vadd.f32 %v41, %v345
  %v362 = vadd.f32 %v42, %v346
  %v363 = vadd.f32 %v43, %v347
  %v364 = vadd.f32 %v44, %v348
  %v365 = vadd.f32 %v45, %v349
  %v366 = vadd.f32 %v46, %v350
  %v367 = vadd.f32 %v47, %v351
  %v368 = vadd.f32 %v48, %v352
  %v369 = vadd.f32 %v49, %v353
  %v370 = vadd.f32 %v50, %v354
  %v371 = vadd.f32 %v51, %v355
  %v372 = vadd.f32 %v52, %v356
  %v373 = vadd.f32 %v53, %v357
  %p374 = scmp.eq.s32.totalorder 0, 0
  // Predicated region
  $region34: #{bayesian_linear_forward.1} parent=0 // pred_check
    %p375 = pneg %p374
  $region35: #{bayesian_linear_forward.1} parent=0 // pred_check_branch
    %377 = sbr.rel (%p375) target = $region37
  $region36: #{bayesian_linear_forward.1} parent=0 // pred_region
    %p378 = scmp.eq.s32.totalorder 0, 0
    %p379 = por %p378, %p30
    // Predicated region
    $region38: #{bayesian_linear_forward.1} parent=36 // pred_check
      %p380 = pneg %p379
    $region39: #{bayesian_linear_forward.1} parent=36 // pred_check_branch
      %382 = sbr.rel (%p380) target = $region41
    $region40: #{bayesian_linear_forward.1} parent=36 // pred_region
      %s383 = smul.u32 0, 128
      %v384 = vlaneseq
      %v385 = vshrl.u32 %v384, 7
      %v386 = vadd.s32 %v385, 8
      %v387 = vadd.s32 %v385, 16
      %v388 = vadd.s32 %v385, 24
      %v389 = vadd.s32 %v385, 32
      %v390 = vadd.s32 %v385, 40
      %v391 = vadd.s32 %v385, 48
      %v392 = vadd.s32 %v385, 56
      %v393 = vadd.s32 %v385, 64
      %v394 = vadd.s32 %v385, 72
      %v395 = vadd.s32 %v385, 80
      %v396 = vadd.s32 %v385, 88
      %v397 = vadd.s32 %v385, 96
      %v398 = vadd.s32 %v385, 104
      %v399 = vadd.s32 %v385, 112
      %v400 = vadd.s32 %v385, 120
      %v401 = vstv %s383
      %v402 = vadd.s32 %v401, %v385
      %v403 = vadd.s32 %v401, %v386
      %v404 = vadd.s32 %v401, %v387
      %v405 = vadd.s32 %v401, %v388
      %v406 = vadd.s32 %v401, %v389
      %v407 = vadd.s32 %v401, %v390
      %v408 = vadd.s32 %v401, %v391
      %v409 = vadd.s32 %v401, %v392
      %v410 = vadd.s32 %v401, %v393
      %v411 = vadd.s32 %v401, %v394
      %v412 = vadd.s32 %v401, %v395
      %v413 = vadd.s32 %v401, %v396
      %v414 = vadd.s32 %v401, %v397
      %v415 = vadd.s32 %v401, %v398
      %v416 = vadd.s32 %v401, %v399
      %v417 = vadd.s32 %v401, %v400
      %vm418 = vcmp.lt.s32.totalorder %v402, 16
      %vm419 = vcmp.lt.s32.totalorder %v403, 16
      %vm420 = vcmp.lt.s32.totalorder %v404, 16
      %vm421 = vcmp.lt.s32.totalorder %v405, 16
      %vm422 = vcmp.lt.s32.totalorder %v406, 16
      %vm423 = vcmp.lt.s32.totalorder %v407, 16
      %vm424 = vcmp.lt.s32.totalorder %v408, 16
      %vm425 = vcmp.lt.s32.totalorder %v409, 16
      %vm426 = vcmp.lt.s32.totalorder %v410, 16
      %vm427 = vcmp.lt.s32.totalorder %v411, 16
      %vm428 = vcmp.lt.s32.totalorder %v412, 16
      %vm429 = vcmp.lt.s32.totalorder %v413, 16
      %vm430 = vcmp.lt.s32.totalorder %v414, 16
      %vm431 = vcmp.lt.s32.totalorder %v415, 16
      %vm432 = vcmp.lt.s32.totalorder %v416, 16
      %vm433 = vcmp.lt.s32.totalorder %v417, 16
      %s434 = smul.u32 0, 128
      %v435 = vlaneseq
      %v436 = vand.u32 %v435, 127
      %v437 = vstv %s434
      %v438 = vadd.s32 %v437, %v436
      %vm439 = vcmp.lt.s32.totalorder %v438, 32
      %vm440 = vmand %vm418, %vm439
      %vm441 = vmand %vm419, %vm439
      %vm442 = vmand %vm420, %vm439
      %vm443 = vmand %vm421, %vm439
      %vm444 = vmand %vm422, %vm439
      %vm445 = vmand %vm423, %vm439
      %vm446 = vmand %vm424, %vm439
      %vm447 = vmand %vm425, %vm439
      %vm448 = vmand %vm426, %vm439
      %vm449 = vmand %vm427, %vm439
      %vm450 = vmand %vm428, %vm439
      %vm451 = vmand %vm429, %vm439
      %vm452 = vmand %vm430, %vm439
      %vm453 = vmand %vm431, %vm439
      %vm454 = vmand %vm432, %vm439
      %vm455 = vmand %vm433, %vm439
      %v456 = vlog2.pop %v326
      %v457 = vmul.f32 %v456, 0.6931472
      %v458 = vlog2.pop %v327
      %v459 = vmul.f32 %v458, 0.6931472
      %v460 = vlog2.pop %v328
      %v461 = vmul.f32 %v460, 0.6931472
      %v462 = vlog2.pop %v329
      %v463 = vmul.f32 %v462, 0.6931472
      %v464 = vlog2.pop %v330
      %v465 = vmul.f32 %v464, 0.6931472
      %v466 = vlog2.pop %v331
      %v467 = vmul.f32 %v466, 0.6931472
      %v468 = vlog2.pop %v332
      %v469 = vmul.f32 %v468, 0.6931472
      %v470 = vlog2.pop %v333
      %v471 = vmul.f32 %v470, 0.6931472
      %v472 = vlog2.pop %v334
      %v473 = vmul.f32 %v472, 0.6931472
      %v474 = vlog2.pop %v335
      %v475 = vmul.f32 %v474, 0.6931472
      %v476 = vlog2.pop %v336
      %v477 = vmul.f32 %v476, 0.6931472
      %v478 = vlog2.pop %v337
      %v479 = vmul.f32 %v478, 0.6931472
      %v480 = vlog2.pop %v338
      %v481 = vmul.f32 %v480, 0.6931472
      %v482 = vlog2.pop %v339
      %v483 = vmul.f32 %v482, 0.6931472
      %v484 = vlog2.pop %v340
      %v485 = vmul.f32 %v484, 0.6931472
      %v486 = vlog2.pop %v341
      %v487 = vmul.f32 %v486, 0.6931472
      %v488 = vsub.f32 -0.9189385, %v457
      %v489 = vsub.f32 -0.9189385, %v459
      %v490 = vsub.f32 -0.9189385, %v461
      %v491 = vsub.f32 -0.9189385, %v463
      %v492 = vsub.f32 -0.9189385, %v465
      %v493 = vsub.f32 -0.9189385, %v467
      %v494 = vsub.f32 -0.9189385, %v469
      %v495 = vsub.f32 -0.9189385, %v471
      %v496 = vsub.f32 -0.9189385, %v473
      %v497 = vsub.f32 -0.9189385, %v475
      %v498 = vsub.f32 -0.9189385, %v477
      %v499 = vsub.f32 -0.9189385, %v479
      %v500 = vsub.f32 -0.9189385, %v481
      %v501 = vsub.f32 -0.9189385, %v483
      %v502 = vsub.f32 -0.9189385, %v485
      %v503 = vsub.f32 -0.9189385, %v487
      %v504 = vmul.f32 %v86, %v86
      %v505 = vmul.f32 %v87, %v87
      %v506 = vmul.f32 %v88, %v88
      %v507 = vmul.f32 %v89, %v89
      %v508 = vmul.f32 %v90, %v90
      %v509 = vmul.f32 %v91, %v91
      %v510 = vmul.f32 %v92, %v92
      %v511 = vmul.f32 %v93, %v93
      %v512 = vmul.f32 %v94, %v94
      %v513 = vmul.f32 %v95, %v95
      %v514 = vmul.f32 %v96, %v96
      %v515 = vmul.f32 %v97, %v97
      %v516 = vmul.f32 %v98, %v98
      %v517 = vmul.f32 %v99, %v99
      %v518 = vmul.f32 %v100, %v100
      %v519 = vmul.f32 %v101, %v101
      %v520 = vmul.f32 %v504, 0.5
      %v521 = vmul.f32 %v505, 0.5
      %v522 = vmul.f32 %v506, 0.5
      %v523 = vmul.f32 %v507, 0.5
      %v524 = vmul.f32 %v508, 0.5
      %v525 = vmul.f32 %v509, 0.5
      %v526 = vmul.f32 %v510, 0.5
      %v527 = vmul.f32 %v511, 0.5
      %v528 = vmul.f32 %v512, 0.5
      %v529 = vmul.f32 %v513, 0.5
      %v530 = vmul.f32 %v514, 0.5
      %v531 = vmul.f32 %v515, 0.5
      %v532 = vmul.f32 %v516, 0.5
      %v533 = vmul.f32 %v517, 0.5
      %v534 = vmul.f32 %v518, 0.5
      %v535 = vmul.f32 %v519, 0.5
      %v536 = vsub.f32 %v488, %v520
      %v537 = vsub.f32 %v489, %v521
      %v538 = vsub.f32 %v490, %v522
      %v539 = vsub.f32 %v491, %v523
      %v540 = vsub.f32 %v492, %v524
      %v541 = vsub.f32 %v493, %v525
      %v542 = vsub.f32 %v494, %v526
      %v543 = vsub.f32 %v495, %v527
      %v544 = vsub.f32 %v496, %v528
      %v545 = vsub.f32 %v497, %v529
      %v546 = vsub.f32 %v498, %v530
      %v547 = vsub.f32 %v499, %v531
      %v548 = vsub.f32 %v500, %v532
      %v549 = vsub.f32 %v501, %v533
      %v550 = vsub.f32 %v502, %v534
      %v551 = vsub.f32 %v503, %v535
      %v552 = vmul.f32 %v358, %v358
      %v553 = vmul.f32 %v359, %v359
      %v554 = vmul.f32 %v360, %v360
      %v555 = vmul.f32 %v361, %v361
      %v556 = vmul.f32 %v362, %v362
      %v557 = vmul.f32 %v363, %v363
      %v558 = vmul.f32 %v364, %v364
      %v559 = vmul.f32 %v365, %v365
      %v560 = vmul.f32 %v366, %v366
      %v561 = vmul.f32 %v367, %v367
      %v562 = vmul.f32 %v368, %v368
      %v563 = vmul.f32 %v369, %v369
      %v564 = vmul.f32 %v370, %v370
      %v565 = vmul.f32 %v371, %v371
      %v566 = vmul.f32 %v372, %v372
      %v567 = vmul.f32 %v373, %v373
      %v568 = vmul.f32 %v552, 0.5
      %v569 = vmul.f32 %v553, 0.5
      %v570 = vmul.f32 %v554, 0.5
      %v571 = vmul.f32 %v555, 0.5
      %v572 = vmul.f32 %v556, 0.5
      %v573 = vmul.f32 %v557, 0.5
      %v574 = vmul.f32 %v558, 0.5
      %v575 = vmul.f32 %v559, 0.5
      %v576 = vmul.f32 %v560, 0.5
      %v577 = vmul.f32 %v561, 0.5
      %v578 = vmul.f32 %v562, 0.5
      %v579 = vmul.f32 %v563, 0.5
      %v580 = vmul.f32 %v564, 0.5
      %v581 = vmul.f32 %v565, 0.5
      %v582 = vmul.f32 %v566, 0.5
      %v583 = vmul.f32 %v567, 0.5
      %v584 = vsub.f32 -1.6120857, %v568
      %v585 = vsub.f32 -1.6120857, %v569
      %v586 = vsub.f32 -1.6120857, %v570
      %v587 = vsub.f32 -1.6120857, %v571
      %v588 = vsub.f32 -1.6120857, %v572
      %v589 = vsub.f32 -1.6120857, %v573
      %v590 = vsub.f32 -1.6120857, %v574
      %v591 = vsub.f32 -1.6120857, %v575
      %v592 = vsub.f32 -1.6120857, %v576
      %v593 = vsub.f32 -1.6120857, %v577
      %v594 = vsub.f32 -1.6120857, %v578
      %v595 = vsub.f32 -1.6120857, %v579
      %v596 = vsub.f32 -1.6120857, %v580
      %v597 = vsub.f32 -1.6120857, %v581
      %v598 = vsub.f32 -1.6120857, %v582
      %v599 = vsub.f32 -1.6120857, %v583
      %v600 = vmul.f32 %v552, 81377.4
      %v601 = vmul.f32 %v553, 81377.4
      %v602 = vmul.f32 %v554, 81377.4
      %v603 = vmul.f32 %v555, 81377.4
      %v604 = vmul.f32 %v556, 81377.4
      %v605 = vmul.f32 %v557, 81377.4
      %v606 = vmul.f32 %v558, 81377.4
      %v607 = vmul.f32 %v559, 81377.4
      %v608 = vmul.f32 %v560, 81377.4
      %v609 = vmul.f32 %v561, 81377.4
      %v610 = vmul.f32 %v562, 81377.4
      %v611 = vmul.f32 %v563, 81377.4
      %v612 = vmul.f32 %v564, 81377.4
      %v613 = vmul.f32 %v565, 81377.4
      %v614 = vmul.f32 %v566, 81377.4
      %v615 = vmul.f32 %v567, 81377.4
      %v616 = vsub.f32 4.387914, %v600
      %v617 = vsub.f32 4.387914, %v601
      %v618 = vsub.f32 4.387914, %v602
      %v619 = vsub.f32 4.387914, %v603
      %v620 = vsub.f32 4.387914, %v604
      %v621 = vsub.f32 4.387914, %v605
      %v622 = vsub.f32 4.387914, %v606
      %v623 = vsub.f32 4.387914, %v607
      %v624 = vsub.f32 4.387914, %v608
      %v625 = vsub.f32 4.387914, %v609
      %v626 = vsub.f32 4.387914, %v610
      %v627 = vsub.f32 4.387914, %v611
      %v628 = vsub.f32 4.387914, %v612
      %v629 = vsub.f32 4.387914, %v613
      %v630 = vsub.f32 4.387914, %v614
      %v631 = vsub.f32 4.387914, %v615
      %v632 = vmax.f32 %v584, %v616
      %v633 = vmax.f32 %v585, %v617
      %v634 = vmax.f32 %v586, %v618
      %v635 = vmax.f32 %v587, %v619
      %v636 = vmax.f32 %v588, %v620
      %v637 = vmax.f32 %v589, %v621
      %v638 = vmax.f32 %v590, %v622
      %v639 = vmax.f32 %v591, %v623
      %v640 = vmax.f32 %v592, %v624
      %v641 = vmax.f32 %v593, %v625
      %v642 = vmax.f32 %v594, %v626
      %v643 = vmax.f32 %v595, %v627
      %v644 = vmax.f32 %v596, %v628
      %v645 = vmax.f32 %v597, %v629
      %v646 = vmax.f32 %v598, %v630
      %v647 = vmax.f32 %v599, %v631
      %v648 = vsub.f32 %v584, %v616
      %v649 = vsub.f32 %v585, %v617
      %v650 = vsub.f32 %v586, %v618
      %v651 = vsub.f32 %v587, %v619
      %v652 = vsub.f32 %v588, %v620
      %v653 = vsub.f32 %v589, %v621
      %v654 = vsub.f32 %v590, %v622
      %v655 = vsub.f32 %v591, %v623
      %v656 = vsub.f32 %v592, %v624
      %v657 = vsub.f32 %v593, %v625
      %v658 = vsub.f32 %v594, %v626
      %v659 = vsub.f32 %v595, %v627
      %v660 = vsub.f32 %v596, %v628
      %v661 = vsub.f32 %v597, %v629
      %v662 = vsub.f32 %v598, %v630
      %v663 = vsub.f32 %v599, %v631
      %v664 = vand.u32 2147483647, %v648
      %v665 = vand.u32 2147483647, %v649
      %v666 = vand.u32 2147483647, %v650
      %v667 = vand.u32 2147483647, %v651
      %v668 = vand.u32 2147483647, %v652
      %v669 = vand.u32 2147483647, %v653
      %v670 = vand.u32 2147483647, %v654
      %v671 = vand.u32 2147483647, %v655
      %v672 = vand.u32 2147483647, %v656
      %v673 = vand.u32 2147483647, %v657
      %v674 = vand.u32 2147483647, %v658
      %v675 = vand.u32 2147483647, %v659
      %v676 = vand.u32 2147483647, %v660
      %v677 = vand.u32 2147483647, %v661
      %v678 = vand.u32 2147483647, %v662
      %v679 = vand.u32 2147483647, %v663
      %v680 = vsub.f32 0.0, %v664
      %v681 = vsub.f32 0.0, %v665
      %v682 = vsub.f32 0.0, %v666
      %v683 = vsub.f32 0.0, %v667
      %v684 = vsub.f32 0.0, %v668
      %v685 = vsub.f32 0.0, %v669
      %v686 = vsub.f32 0.0, %v670
      %v687 = vsub.f32 0.0, %v671
      %v688 = vsub.f32 0.0, %v672
      %v689 = vsub.f32 0.0, %v673
      %v690 = vsub.f32 0.0, %v674
      %v691 = vsub.f32 0.0, %v675
      %v692 = vsub.f32 0.0, %v676
      %v693 = vsub.f32 0.0, %v677
      %v694 = vsub.f32 0.0, %v678
      %v695 = vsub.f32 0.0, %v679
      %v696 = vmul.f32 %v680, 1.442695
      %v697 = vpow.pop %v696
      %v698 = vmul.f32 %v681, 1.442695
      %v699 = vpow.pop %v698
      %v700 = vmul.f32 %v682, 1.442695
      %v701 = vpow.pop %v700
      %v702 = vmul.f32 %v683, 1.442695
      %v703 = vpow.pop %v702
      %v704 = vmul.f32 %v684, 1.442695
      %v705 = vpow.pop %v704
      %v706 = vmul.f32 %v685, 1.442695
      %v707 = vpow.pop %v706
      %v708 = vmul.f32 %v686, 1.442695
      %v709 = vpow.pop %v708
      %v710 = vmul.f32 %v687, 1.442695
      %v711 = vpow.pop %v710
      %v712 = vmul.f32 %v688, 1.442695
      %v713 = vpow.pop %v712
      %v714 = vmul.f32 %v689, 1.442695
      %v715 = vpow.pop %v714
      %v716 = vmul.f32 %v690, 1.442695
      %v717 = vpow.pop %v716
      %v718 = vmul.f32 %v691, 1.442695
      %v719 = vpow.pop %v718
      %v720 = vmul.f32 %v692, 1.442695
      %v721 = vpow.pop %v720
      %v722 = vmul.f32 %v693, 1.442695
      %v723 = vpow.pop %v722
      %v724 = vmul.f32 %v694, 1.442695
      %v725 = vpow.pop %v724
      %v726 = vmul.f32 %v695, 1.442695
      %v727 = vpow.pop %v726
      %v728 = vadd.f32 %v697, 1.0
      %v729 = vlog2.pop %v728
      %v730 = vmul.f32 %v729, 0.6931472
      %v731 = vmul.f32 -0.5, %v697
      %v732 = vadd.f32 %v731, 1.0
      %v733 = vmul.f32 %v732, %v697
      %v734 = vand.u32 2147483647, %v697
      %vm735 = vcmp.lt.f32.partialorder %v734, 0.0004427343
      %v736 = vsel %vm735, %v733, %v730
      %v737 = vadd.f32 %v699, 1.0
      %v738 = vlog2.pop %v737
      %v739 = vmul.f32 %v738, 0.6931472
      %v740 = vmul.f32 -0.5, %v699
      %v741 = vadd.f32 %v740, 1.0
      %v742 = vmul.f32 %v741, %v699
      %v743 = vand.u32 2147483647, %v699
      %vm744 = vcmp.lt.f32.partialorder %v743, 0.0004427343
      %v745 = vsel %vm744, %v742, %v739
      %v746 = vadd.f32 %v701, 1.0
      %v747 = vlog2.pop %v746
      %v748 = vmul.f32 %v747, 0.6931472
      %v749 = vmul.f32 -0.5, %v701
      %v750 = vadd.f32 %v749, 1.0
      %v751 = vmul.f32 %v750, %v701
      %v752 = vand.u32 2147483647, %v701
      %vm753 = vcmp.lt.f32.partialorder %v752, 0.0004427343
      %v754 = vsel %vm753, %v751, %v748
      %v755 = vadd.f32 %v703, 1.0
      %v756 = vlog2.pop %v755
      %v757 = vmul.f32 %v756, 0.6931472
      %v758 = vmul.f32 -0.5, %v703
      %v759 = vadd.f32 %v758, 1.0
      %v760 = vmul.f32 %v759, %v703
      %v761 = vand.u32 2147483647, %v703
      %vm762 = vcmp.lt.f32.partialorder %v761, 0.0004427343
      %v763 = vsel %vm762, %v760, %v757
      %v764 = vadd.f32 %v705, 1.0
      %v765 = vlog2.pop %v764
      %v766 = vmul.f32 %v765, 0.6931472
      %v767 = vmul.f32 -0.5, %v705
      %v768 = vadd.f32 %v767, 1.0
      %v769 = vmul.f32 %v768, %v705
      %v770 = vand.u32 2147483647, %v705
      %vm771 = vcmp.lt.f32.partialorder %v770, 0.0004427343
      %v772 = vsel %vm771, %v769, %v766
      %v773 = vadd.f32 %v707, 1.0
      %v774 = vlog2.pop %v773
      %v775 = vmul.f32 %v774, 0.6931472
      %v776 = vmul.f32 -0.5, %v707
      %v777 = vadd.f32 %v776, 1.0
      %v778 = vmul.f32 %v777, %v707
      %v779 = vand.u32 2147483647, %v707
      %vm780 = vcmp.lt.f32.partialorder %v779, 0.0004427343
      %v781 = vsel %vm780, %v778, %v775
      %v782 = vadd.f32 %v709, 1.0
      %v783 = vlog2.pop %v782
      %v784 = vmul.f32 %v783, 0.6931472
      %v785 = vmul.f32 -0.5, %v709
      %v786 = vadd.f32 %v785, 1.0
      %v787 = vmul.f32 %v786, %v709
      %v788 = vand.u32 2147483647, %v709
      %vm789 = vcmp.lt.f32.partialorder %v788, 0.0004427343
      %v790 = vsel %vm789, %v787, %v784
      %v791 = vadd.f32 %v711, 1.0
      %v792 = vlog2.pop %v791
      %v793 = vmul.f32 %v792, 0.6931472
      %v794 = vmul.f32 -0.5, %v711
      %v795 = vadd.f32 %v794, 1.0
      %v796 = vmul.f32 %v795, %v711
      %v797 = vand.u32 2147483647, %v711
      %vm798 = vcmp.lt.f32.partialorder %v797, 0.0004427343
      %v799 = vsel %vm798, %v796, %v793
      %v800 = vadd.f32 %v713, 1.0
      %v801 = vlog2.pop %v800
      %v802 = vmul.f32 %v801, 0.6931472
      %v803 = vmul.f32 -0.5, %v713
      %v804 = vadd.f32 %v803, 1.0
      %v805 = vmul.f32 %v804, %v713
      %v806 = vand.u32 2147483647, %v713
      %vm807 = vcmp.lt.f32.partialorder %v806, 0.0004427343
      %v808 = vsel %vm807, %v805, %v802
      %v809 = vadd.f32 %v715, 1.0
      %v810 = vlog2.pop %v809
      %v811 = vmul.f32 %v810, 0.6931472
      %v812 = vmul.f32 -0.5, %v715
      %v813 = vadd.f32 %v812, 1.0
      %v814 = vmul.f32 %v813, %v715
      %v815 = vand.u32 2147483647, %v715
      %vm816 = vcmp.lt.f32.partialorder %v815, 0.0004427343
      %v817 = vsel %vm816, %v814, %v811
      %v818 = vadd.f32 %v717, 1.0
      %v819 = vlog2.pop %v818
      %v820 = vmul.f32 %v819, 0.6931472
      %v821 = vmul.f32 -0.5, %v717
      %v822 = vadd.f32 %v821, 1.0
      %v823 = vmul.f32 %v822, %v717
      %v824 = vand.u32 2147483647, %v717
      %vm825 = vcmp.lt.f32.partialorder %v824, 0.0004427343
      %v826 = vsel %vm825, %v823, %v820
      %v827 = vadd.f32 %v719, 1.0
      %v828 = vlog2.pop %v827
      %v829 = vmul.f32 %v828, 0.6931472
      %v830 = vmul.f32 -0.5, %v719
      %v831 = vadd.f32 %v830, 1.0
      %v832 = vmul.f32 %v831, %v719
      %v833 = vand.u32 2147483647, %v719
      %vm834 = vcmp.lt.f32.partialorder %v833, 0.0004427343
      %v835 = vsel %vm834, %v832, %v829
      %v836 = vadd.f32 %v721, 1.0
      %v837 = vlog2.pop %v836
      %v838 = vmul.f32 %v837, 0.6931472
      %v839 = vmul.f32 -0.5, %v721
      %v840 = vadd.f32 %v839, 1.0
      %v841 = vmul.f32 %v840, %v721
      %v842 = vand.u32 2147483647, %v721
      %vm843 = vcmp.lt.f32.partialorder %v842, 0.0004427343
      %v844 = vsel %vm843, %v841, %v838
      %v845 = vadd.f32 %v723, 1.0
      %v846 = vlog2.pop %v845
      %v847 = vmul.f32 %v846, 0.6931472
      %v848 = vmul.f32 -0.5, %v723
      %v849 = vadd.f32 %v848, 1.0
      %v850 = vmul.f32 %v849, %v723
      %v851 = vand.u32 2147483647, %v723
      %vm852 = vcmp.lt.f32.partialorder %v851, 0.0004427343
      %v853 = vsel %vm852, %v850, %v847
      %v854 = vadd.f32 %v725, 1.0
      %v855 = vlog2.pop %v854
      %v856 = vmul.f32 %v855, 0.6931472
      %v857 = vmul.f32 -0.5, %v725
      %v858 = vadd.f32 %v857, 1.0
      %v859 = vmul.f32 %v858, %v725
      %v860 = vand.u32 2147483647, %v725
      %vm861 = vcmp.lt.f32.partialorder %v860, 0.0004427343
      %v862 = vsel %vm861, %v859, %v856
      %v863 = vadd.f32 %v727, 1.0
      %v864 = vlog2.pop %v863
      %v865 = vmul.f32 %v864, 0.6931472
      %v866 = vmul.f32 -0.5, %v727
      %v867 = vadd.f32 %v866, 1.0
      %v868 = vmul.f32 %v867, %v727
      %v869 = vand.u32 2147483647, %v727
      %vm870 = vcmp.lt.f32.partialorder %v869, 0.0004427343
      %v871 = vsel %vm870, %v868, %v865
      %v872 = vadd.f32 %v632, %v736
      %v873 = vadd.f32 %v633, %v745
      %v874 = vadd.f32 %v634, %v754
      %v875 = vadd.f32 %v635, %v763
      %v876 = vadd.f32 %v636, %v772
      %v877 = vadd.f32 %v637, %v781
      %v878 = vadd.f32 %v638, %v790
      %v879 = vadd.f32 %v639, %v799
      %v880 = vadd.f32 %v640, %v808
      %v881 = vadd.f32 %v641, %v817
      %v882 = vadd.f32 %v642, %v826
      %v883 = vadd.f32 %v643, %v835
      %v884 = vadd.f32 %v644, %v844
      %v885 = vadd.f32 %v645, %v853
      %v886 = vadd.f32 %v646, %v862
      %v887 = vadd.f32 %v647, %v871
      %v888 = vsel %vm440, %v536, 0.0
      %v889 = vsel %vm441, %v537, 0.0
      %v890 = vsel %vm442, %v538, 0.0
      %v891 = vsel %vm443, %v539, 0.0
      %v892 = vsel %vm444, %v540, 0.0
      %v893 = vsel %vm445, %v541, 0.0
      %v894 = vsel %vm446, %v542, 0.0
      %v895 = vsel %vm447, %v543, 0.0
      %v896 = vsel %vm448, %v544, 0.0
      %v897 = vsel %vm449, %v545, 0.0
      %v898 = vsel %vm450, %v546, 0.0
      %v899 = vsel %vm451, %v547, 0.0
      %v900 = vsel %vm452, %v548, 0.0
      %v901 = vsel %vm453, %v549, 0.0
      %v902 = vsel %vm454, %v550, 0.0
      %v903 = vsel %vm455, %v551, 0.0
      %v904 = vsel %vm440, %v872, 0.0
      %v905 = vsel %vm441, %v873, 0.0
      %v906 = vsel %vm442, %v874, 0.0
      %v907 = vsel %vm443, %v875, 0.0
      %v908 = vsel %vm444, %v876, 0.0
      %v909 = vsel %vm445, %v877, 0.0
      %v910 = vsel %vm446, %v878, 0.0
      %v911 = vsel %vm447, %v879, 0.0
      %v912 = vsel %vm448, %v880, 0.0
      %v913 = vsel %vm449, %v881, 0.0
      %v914 = vsel %vm450, %v882, 0.0
      %v915 = vsel %vm451, %v883, 0.0
      %v916 = vsel %vm452, %v884, 0.0
      %v917 = vsel %vm453, %v885, 0.0
      %v918 = vsel %vm454, %v886, 0.0
      %v919 = vsel %vm455, %v887, 0.0
      %v920 = vld [vmem:[%s8] sm:$0xff]
      %v921 = vadd.f32 %v904, %v912
      %v922 = vadd.f32 %v905, %v913
      %v923 = vadd.f32 %v906, %v914
      %v924 = vadd.f32 %v907, %v915
      %v925 = vadd.f32 %v908, %v916
      %v926 = vadd.f32 %v909, %v917
      %v927 = vadd.f32 %v910, %v918
      %v928 = vadd.f32 %v911, %v919
      %v929 = vadd.f32 %v921, %v922
      %v930 = vadd.f32 %v929, %v923
      %v931 = vadd.f32 %v930, %v924
      %v932 = vadd.f32 %v931, %v925
      %v933 = vadd.f32 %v932, %v926
      %v934 = vadd.f32 %v933, %v927
      %v935 = vadd.f32 %v934, %v928
      %v936 = vadd.f32 %v920, %v935
      %937 = vst [vmem:[%s8] sm:$0xff] %v936
      %v938 = vld [vmem:[%s9] sm:$0xff]
      %v939 = vadd.f32 %v888, %v896
      %v940 = vadd.f32 %v889, %v897
      %v941 = vadd.f32 %v890, %v898
      %v942 = vadd.f32 %v891, %v899
      %v943 = vadd.f32 %v892, %v900
      %v944 = vadd.f32 %v893, %v901
      %v945 = vadd.f32 %v894, %v902
      %v946 = vadd.f32 %v895, %v903
      %v947 = vadd.f32 %v939, %v940
      %v948 = vadd.f32 %v947, %v941
      %v949 = vadd.f32 %v948, %v942
      %v950 = vadd.f32 %v949, %v943
      %v951 = vadd.f32 %v950, %v944
      %v952 = vadd.f32 %v951, %v945
      %v953 = vadd.f32 %v952, %v946
      %v954 = vadd.f32 %v938, %v953
      %955 = vst [vmem:[%s9] sm:$0xff] %v954
    $region41: #{bayesian_linear_forward.1} parent=36 // pred_fallthru
      _
    %p956 = pneg %p379
    // Predicated region
    $region42: #{bayesian_linear_forward.1} parent=36 // pred_check
      _
    $region43: #{bayesian_linear_forward.1} parent=36 // pred_check_branch
      %958 = sbr.rel (%p379) target = $region45
    $region44: #{bayesian_linear_forward.1} parent=36 // pred_region
      %v959 = vlog2.pop %v326
      %v960 = vmul.f32 %v959, 0.6931472
      %v961 = vlog2.pop %v327
      %v962 = vmul.f32 %v961, 0.6931472
      %v963 = vlog2.pop %v328
      %v964 = vmul.f32 %v963, 0.6931472
      %v965 = vlog2.pop %v329
      %v966 = vmul.f32 %v965, 0.6931472
      %v967 = vlog2.pop %v330
      %v968 = vmul.f32 %v967, 0.6931472
      %v969 = vlog2.pop %v331
      %v970 = vmul.f32 %v969, 0.6931472
      %v971 = vlog2.pop %v332
      %v972 = vmul.f32 %v971, 0.6931472
      %v973 = vlog2.pop %v333
      %v974 = vmul.f32 %v973, 0.6931472
      %v975 = vlog2.pop %v334
      %v976 = vmul.f32 %v975, 0.6931472
      %v977 = vlog2.pop %v335
      %v978 = vmul.f32 %v977, 0.6931472
      %v979 = vlog2.pop %v336
      %v980 = vmul.f32 %v979, 0.6931472
      %v981 = vlog2.pop %v337
      %v982 = vmul.f32 %v981, 0.6931472
      %v983 = vlog2.pop %v338
      %v984 = vmul.f32 %v983, 0.6931472
      %v985 = vlog2.pop %v339
      %v986 = vmul.f32 %v985, 0.6931472
      %v987 = vlog2.pop %v340
      %v988 = vmul.f32 %v987, 0.6931472
      %v989 = vlog2.pop %v341
      %v990 = vmul.f32 %v989, 0.6931472
      %v991 = vsub.f32 -0.9189385, %v960
      %v992 = vsub.f32 -0.9189385, %v962
      %v993 = vsub.f32 -0.9189385, %v964
      %v994 = vsub.f32 -0.9189385, %v966
      %v995 = vsub.f32 -0.9189385, %v968
      %v996 = vsub.f32 -0.9189385, %v970
      %v997 = vsub.f32 -0.9189385, %v972
      %v998 = vsub.f32 -0.9189385, %v974
      %v999 = vsub.f32 -0.9189385, %v976
      %v1000 = vsub.f32 -0.9189385, %v978
      %v1001 = vsub.f32 -0.9189385, %v980
      %v1002 = vsub.f32 -0.9189385, %v982
      %v1003 = vsub.f32 -0.9189385, %v984
      %v1004 = vsub.f32 -0.9189385, %v986
      %v1005 = vsub.f32 -0.9189385, %v988
      %v1006 = vsub.f32 -0.9189385, %v990
      %v1007 = vmul.f32 %v86, %v86
      %v1008 = vmul.f32 %v87, %v87
      %v1009 = vmul.f32 %v88, %v88
      %v1010 = vmul.f32 %v89, %v89
      %v1011 = vmul.f32 %v90, %v90
      %v1012 = vmul.f32 %v91, %v91
      %v1013 = vmul.f32 %v92, %v92
      %v1014 = vmul.f32 %v93, %v93
      %v1015 = vmul.f32 %v94, %v94
      %v1016 = vmul.f32 %v95, %v95
      %v1017 = vmul.f32 %v96, %v96
      %v1018 = vmul.f32 %v97, %v97
      %v1019 = vmul.f32 %v98, %v98
      %v1020 = vmul.f32 %v99, %v99
      %v1021 = vmul.f32 %v100, %v100
      %v1022 = vmul.f32 %v101, %v101
      %v1023 = vmul.f32 %v1007, 0.5
      %v1024 = vmul.f32 %v1008, 0.5
      %v1025 = vmul.f32 %v1009, 0.5
      %v1026 = vmul.f32 %v1010, 0.5
      %v1027 = vmul.f32 %v1011, 0.5
      %v1028 = vmul.f32 %v1012, 0.5
      %v1029 = vmul.f32 %v1013, 0.5
      %v1030 = vmul.f32 %v1014, 0.5
      %v1031 = vmul.f32 %v1015, 0.5
      %v1032 = vmul.f32 %v1016, 0.5
      %v1033 = vmul.f32 %v1017, 0.5
      %v1034 = vmul.f32 %v1018, 0.5
      %v1035 = vmul.f32 %v1019, 0.5
      %v1036 = vmul.f32 %v1020, 0.5
      %v1037 = vmul.f32 %v1021, 0.5
      %v1038 = vmul.f32 %v1022, 0.5
      %v1039 = vsub.f32 %v991, %v1023
      %v1040 = vsub.f32 %v992, %v1024
      %v1041 = vsub.f32 %v993, %v1025
      %v1042 = vsub.f32 %v994, %v1026
      %v1043 = vsub.f32 %v995, %v1027
      %v1044 = vsub.f32 %v996, %v1028
      %v1045 = vsub.f32 %v997, %v1029
      %v1046 = vsub.f32 %v998, %v1030
      %v1047 = vsub.f32 %v999, %v1031
      %v1048 = vsub.f32 %v1000, %v1032
      %v1049 = vsub.f32 %v1001, %v1033
      %v1050 = vsub.f32 %v1002, %v1034
      %v1051 = vsub.f32 %v1003, %v1035
      %v1052 = vsub.f32 %v1004, %v1036
      %v1053 = vsub.f32 %v1005, %v1037
      %v1054 = vsub.f32 %v1006, %v1038
      %v1055 = vmul.f32 %v358, %v358
      %v1056 = vmul.f32 %v359, %v359
      %v1057 = vmul.f32 %v360, %v360
      %v1058 = vmul.f32 %v361, %v361
      %v1059 = vmul.f32 %v362, %v362
      %v1060 = vmul.f32 %v363, %v363
      %v1061 = vmul.f32 %v364, %v364
      %v1062 = vmul.f32 %v365, %v365
      %v1063 = vmul.f32 %v366, %v366
      %v1064 = vmul.f32 %v367, %v367
      %v1065 = vmul.f32 %v368, %v368
      %v1066 = vmul.f32 %v369, %v369
      %v1067 = vmul.f32 %v370, %v370
      %v1068 = vmul.f32 %v371, %v371
      %v1069 = vmul.f32 %v372, %v372
      %v1070 = vmul.f32 %v373, %v373
      %v1071 = vmul.f32 %v1055, 0.5
      %v1072 = vmul.f32 %v1056, 0.5
      %v1073 = vmul.f32 %v1057, 0.5
      %v1074 = vmul.f32 %v1058, 0.5
      %v1075 = vmul.f32 %v1059, 0.5
      %v1076 = vmul.f32 %v1060, 0.5
      %v1077 = vmul.f32 %v1061, 0.5
      %v1078 = vmul.f32 %v1062, 0.5
      %v1079 = vmul.f32 %v1063, 0.5
      %v1080 = vmul.f32 %v1064, 0.5
      %v1081 = vmul.f32 %v1065, 0.5
      %v1082 = vmul.f32 %v1066, 0.5
      %v1083 = vmul.f32 %v1067, 0.5
      %v1084 = vmul.f32 %v1068, 0.5
      %v1085 = vmul.f32 %v1069, 0.5
      %v1086 = vmul.f32 %v1070, 0.5
      %v1087 = vsub.f32 -1.6120857, %v1071
      %v1088 = vsub.f32 -1.6120857, %v1072
      %v1089 = vsub.f32 -1.6120857, %v1073
      %v1090 = vsub.f32 -1.6120857, %v1074
      %v1091 = vsub.f32 -1.6120857, %v1075
      %v1092 = vsub.f32 -1.6120857, %v1076
      %v1093 = vsub.f32 -1.6120857, %v1077
      %v1094 = vsub.f32 -1.6120857, %v1078
      %v1095 = vsub.f32 -1.6120857, %v1079
      %v1096 = vsub.f32 -1.6120857, %v1080
      %v1097 = vsub.f32 -1.6120857, %v1081
      %v1098 = vsub.f32 -1.6120857, %v1082
      %v1099 = vsub.f32 -1.6120857, %v1083
      %v1100 = vsub.f32 -1.6120857, %v1084
      %v1101 = vsub.f32 -1.6120857, %v1085
      %v1102 = vsub.f32 -1.6120857, %v1086
      %v1103 = vmul.f32 %v1055, 81377.4
      %v1104 = vmul.f32 %v1056, 81377.4
      %v1105 = vmul.f32 %v1057, 81377.4
      %v1106 = vmul.f32 %v1058, 81377.4
      %v1107 = vmul.f32 %v1059, 81377.4
      %v1108 = vmul.f32 %v1060, 81377.4
      %v1109 = vmul.f32 %v1061, 81377.4
      %v1110 = vmul.f32 %v1062, 81377.4
      %v1111 = vmul.f32 %v1063, 81377.4
      %v1112 = vmul.f32 %v1064, 81377.4
      %v1113 = vmul.f32 %v1065, 81377.4
      %v1114 = vmul.f32 %v1066, 81377.4
      %v1115 = vmul.f32 %v1067, 81377.4
      %v1116 = vmul.f32 %v1068, 81377.4
      %v1117 = vmul.f32 %v1069, 81377.4
      %v1118 = vmul.f32 %v1070, 81377.4
      %v1119 = vsub.f32 4.387914, %v1103
      %v1120 = vsub.f32 4.387914, %v1104
      %v1121 = vsub.f32 4.387914, %v1105
      %v1122 = vsub.f32 4.387914, %v1106
      %v1123 = vsub.f32 4.387914, %v1107
      %v1124 = vsub.f32 4.387914, %v1108
      %v1125 = vsub.f32 4.387914, %v1109
      %v1126 = vsub.f32 4.387914, %v1110
      %v1127 = vsub.f32 4.387914, %v1111
      %v1128 = vsub.f32 4.387914, %v1112
      %v1129 = vsub.f32 4.387914, %v1113
      %v1130 = vsub.f32 4.387914, %v1114
      %v1131 = vsub.f32 4.387914, %v1115
      %v1132 = vsub.f32 4.387914, %v1116
      %v1133 = vsub.f32 4.387914, %v1117
      %v1134 = vsub.f32 4.387914, %v1118
      %v1135 = vmax.f32 %v1087, %v1119
      %v1136 = vmax.f32 %v1088, %v1120
      %v1137 = vmax.f32 %v1089, %v1121
      %v1138 = vmax.f32 %v1090, %v1122
      %v1139 = vmax.f32 %v1091, %v1123
      %v1140 = vmax.f32 %v1092, %v1124
      %v1141 = vmax.f32 %v1093, %v1125
      %v1142 = vmax.f32 %v1094, %v1126
      %v1143 = vmax.f32 %v1095, %v1127
      %v1144 = vmax.f32 %v1096, %v1128
      %v1145 = vmax.f32 %v1097, %v1129
      %v1146 = vmax.f32 %v1098, %v1130
      %v1147 = vmax.f32 %v1099, %v1131
      %v1148 = vmax.f32 %v1100, %v1132
      %v1149 = vmax.f32 %v1101, %v1133
      %v1150 = vmax.f32 %v1102, %v1134
      %v1151 = vsub.f32 %v1087, %v1119
      %v1152 = vsub.f32 %v1088, %v1120
      %v1153 = vsub.f32 %v1089, %v1121
      %v1154 = vsub.f32 %v1090, %v1122
      %v1155 = vsub.f32 %v1091, %v1123
      %v1156 = vsub.f32 %v1092, %v1124
      %v1157 = vsub.f32 %v1093, %v1125
      %v1158 = vsub.f32 %v1094, %v1126
      %v1159 = vsub.f32 %v1095, %v1127
      %v1160 = vsub.f32 %v1096, %v1128
      %v1161 = vsub.f32 %v1097, %v1129
      %v1162 = vsub.f32 %v1098, %v1130
      %v1163 = vsub.f32 %v1099, %v1131
      %v1164 = vsub.f32 %v1100, %v1132
      %v1165 = vsub.f32 %v1101, %v1133
      %v1166 = vsub.f32 %v1102, %v1134
      %v1167 = vand.u32 2147483647, %v1151
      %v1168 = vand.u32 2147483647, %v1152
      %v1169 = vand.u32 2147483647, %v1153
      %v1170 = vand.u32 2147483647, %v1154
      %v1171 = vand.u32 2147483647, %v1155
      %v1172 = vand.u32 2147483647, %v1156
      %v1173 = vand.u32 2147483647, %v1157
      %v1174 = vand.u32 2147483647, %v1158
      %v1175 = vand.u32 2147483647, %v1159
      %v1176 = vand.u32 2147483647, %v1160
      %v1177 = vand.u32 2147483647, %v1161
      %v1178 = vand.u32 2147483647, %v1162
      %v1179 = vand.u32 2147483647, %v1163
      %v1180 = vand.u32 2147483647, %v1164
      %v1181 = vand.u32 2147483647, %v1165
      %v1182 = vand.u32 2147483647, %v1166
      %v1183 = vsub.f32 0.0, %v1167
      %v1184 = vsub.f32 0.0, %v1168
      %v1185 = vsub.f32 0.0, %v1169
      %v1186 = vsub.f32 0.0, %v1170
      %v1187 = vsub.f32 0.0, %v1171
      %v1188 = vsub.f32 0.0, %v1172
      %v1189 = vsub.f32 0.0, %v1173
      %v1190 = vsub.f32 0.0, %v1174
      %v1191 = vsub.f32 0.0, %v1175
      %v1192 = vsub.f32 0.0, %v1176
      %v1193 = vsub.f32 0.0, %v1177
      %v1194 = vsub.f32 0.0, %v1178
      %v1195 = vsub.f32 0.0, %v1179
      %v1196 = vsub.f32 0.0, %v1180
      %v1197 = vsub.f32 0.0, %v1181
      %v1198 = vsub.f32 0.0, %v1182
      %v1199 = vmul.f32 %v1183, 1.442695
      %v1200 = vpow.pop %v1199
      %v1201 = vmul.f32 %v1184, 1.442695
      %v1202 = vpow.pop %v1201
      %v1203 = vmul.f32 %v1185, 1.442695
      %v1204 = vpow.pop %v1203
      %v1205 = vmul.f32 %v1186, 1.442695
      %v1206 = vpow.pop %v1205
      %v1207 = vmul.f32 %v1187, 1.442695
      %v1208 = vpow.pop %v1207
      %v1209 = vmul.f32 %v1188, 1.442695
      %v1210 = vpow.pop %v1209
      %v1211 = vmul.f32 %v1189, 1.442695
      %v1212 = vpow.pop %v1211
      %v1213 = vmul.f32 %v1190, 1.442695
      %v1214 = vpow.pop %v1213
      %v1215 = vmul.f32 %v1191, 1.442695
      %v1216 = vpow.pop %v1215
      %v1217 = vmul.f32 %v1192, 1.442695
      %v1218 = vpow.pop %v1217
      %v1219 = vmul.f32 %v1193, 1.442695
      %v1220 = vpow.pop %v1219
      %v1221 = vmul.f32 %v1194, 1.442695
      %v1222 = vpow.pop %v1221
      %v1223 = vmul.f32 %v1195, 1.442695
      %v1224 = vpow.pop %v1223
      %v1225 = vmul.f32 %v1196, 1.442695
      %v1226 = vpow.pop %v1225
      %v1227 = vmul.f32 %v1197, 1.442695
      %v1228 = vpow.pop %v1227
      %v1229 = vmul.f32 %v1198, 1.442695
      %v1230 = vpow.pop %v1229
      %v1231 = vadd.f32 %v1200, 1.0
      %v1232 = vlog2.pop %v1231
      %v1233 = vmul.f32 %v1232, 0.6931472
      %v1234 = vmul.f32 -0.5, %v1200
      %v1235 = vadd.f32 %v1234, 1.0
      %v1236 = vmul.f32 %v1235, %v1200
      %v1237 = vand.u32 2147483647, %v1200
      %vm1238 = vcmp.lt.f32.partialorder %v1237, 0.0004427343
      %v1239 = vsel %vm1238, %v1236, %v1233
      %v1240 = vadd.f32 %v1202, 1.0
      %v1241 = vlog2.pop %v1240
      %v1242 = vmul.f32 %v1241, 0.6931472
      %v1243 = vmul.f32 -0.5, %v1202
      %v1244 = vadd.f32 %v1243, 1.0
      %v1245 = vmul.f32 %v1244, %v1202
      %v1246 = vand.u32 2147483647, %v1202
      %vm1247 = vcmp.lt.f32.partialorder %v1246, 0.0004427343
      %v1248 = vsel %vm1247, %v1245, %v1242
      %v1249 = vadd.f32 %v1204, 1.0
      %v1250 = vlog2.pop %v1249
      %v1251 = vmul.f32 %v1250, 0.6931472
      %v1252 = vmul.f32 -0.5, %v1204
      %v1253 = vadd.f32 %v1252, 1.0
      %v1254 = vmul.f32 %v1253, %v1204
      %v1255 = vand.u32 2147483647, %v1204
      %vm1256 = vcmp.lt.f32.partialorder %v1255, 0.0004427343
      %v1257 = vsel %vm1256, %v1254, %v1251
      %v1258 = vadd.f32 %v1206, 1.0
      %v1259 = vlog2.pop %v1258
      %v1260 = vmul.f32 %v1259, 0.6931472
      %v1261 = vmul.f32 -0.5, %v1206
      %v1262 = vadd.f32 %v1261, 1.0
      %v1263 = vmul.f32 %v1262, %v1206
      %v1264 = vand.u32 2147483647, %v1206
      %vm1265 = vcmp.lt.f32.partialorder %v1264, 0.0004427343
      %v1266 = vsel %vm1265, %v1263, %v1260
      %v1267 = vadd.f32 %v1208, 1.0
      %v1268 = vlog2.pop %v1267
      %v1269 = vmul.f32 %v1268, 0.6931472
      %v1270 = vmul.f32 -0.5, %v1208
      %v1271 = vadd.f32 %v1270, 1.0
      %v1272 = vmul.f32 %v1271, %v1208
      %v1273 = vand.u32 2147483647, %v1208
      %vm1274 = vcmp.lt.f32.partialorder %v1273, 0.0004427343
      %v1275 = vsel %vm1274, %v1272, %v1269
      %v1276 = vadd.f32 %v1210, 1.0
      %v1277 = vlog2.pop %v1276
      %v1278 = vmul.f32 %v1277, 0.6931472
      %v1279 = vmul.f32 -0.5, %v1210
      %v1280 = vadd.f32 %v1279, 1.0
      %v1281 = vmul.f32 %v1280, %v1210
      %v1282 = vand.u32 2147483647, %v1210
      %vm1283 = vcmp.lt.f32.partialorder %v1282, 0.0004427343
      %v1284 = vsel %vm1283, %v1281, %v1278
      %v1285 = vadd.f32 %v1212, 1.0
      %v1286 = vlog2.pop %v1285
      %v1287 = vmul.f32 %v1286, 0.6931472
      %v1288 = vmul.f32 -0.5, %v1212
      %v1289 = vadd.f32 %v1288, 1.0
      %v1290 = vmul.f32 %v1289, %v1212
      %v1291 = vand.u32 2147483647, %v1212
      %vm1292 = vcmp.lt.f32.partialorder %v1291, 0.0004427343
      %v1293 = vsel %vm1292, %v1290, %v1287
      %v1294 = vadd.f32 %v1214, 1.0
      %v1295 = vlog2.pop %v1294
      %v1296 = vmul.f32 %v1295, 0.6931472
      %v1297 = vmul.f32 -0.5, %v1214
      %v1298 = vadd.f32 %v1297, 1.0
      %v1299 = vmul.f32 %v1298, %v1214
      %v1300 = vand.u32 2147483647, %v1214
      %vm1301 = vcmp.lt.f32.partialorder %v1300, 0.0004427343
      %v1302 = vsel %vm1301, %v1299, %v1296
      %v1303 = vadd.f32 %v1216, 1.0
      %v1304 = vlog2.pop %v1303
      %v1305 = vmul.f32 %v1304, 0.6931472
      %v1306 = vmul.f32 -0.5, %v1216
      %v1307 = vadd.f32 %v1306, 1.0
      %v1308 = vmul.f32 %v1307, %v1216
      %v1309 = vand.u32 2147483647, %v1216
      %vm1310 = vcmp.lt.f32.partialorder %v1309, 0.0004427343
      %v1311 = vsel %vm1310, %v1308, %v1305
      %v1312 = vadd.f32 %v1218, 1.0
      %v1313 = vlog2.pop %v1312
      %v1314 = vmul.f32 %v1313, 0.6931472
      %v1315 = vmul.f32 -0.5, %v1218
      %v1316 = vadd.f32 %v1315, 1.0
      %v1317 = vmul.f32 %v1316, %v1218
      %v1318 = vand.u32 2147483647, %v1218
      %vm1319 = vcmp.lt.f32.partialorder %v1318, 0.0004427343
      %v1320 = vsel %vm1319, %v1317, %v1314
      %v1321 = vadd.f32 %v1220, 1.0
      %v1322 = vlog2.pop %v1321
      %v1323 = vmul.f32 %v1322, 0.6931472
      %v1324 = vmul.f32 -0.5, %v1220
      %v1325 = vadd.f32 %v1324, 1.0
      %v1326 = vmul.f32 %v1325, %v1220
      %v1327 = vand.u32 2147483647, %v1220
      %vm1328 = vcmp.lt.f32.partialorder %v1327, 0.0004427343
      %v1329 = vsel %vm1328, %v1326, %v1323
      %v1330 = vadd.f32 %v1222, 1.0
      %v1331 = vlog2.pop %v1330
      %v1332 = vmul.f32 %v1331, 0.6931472
      %v1333 = vmul.f32 -0.5, %v1222
      %v1334 = vadd.f32 %v1333, 1.0
      %v1335 = vmul.f32 %v1334, %v1222
      %v1336 = vand.u32 2147483647, %v1222
      %vm1337 = vcmp.lt.f32.partialorder %v1336, 0.0004427343
      %v1338 = vsel %vm1337, %v1335, %v1332
      %v1339 = vadd.f32 %v1224, 1.0
      %v1340 = vlog2.pop %v1339
      %v1341 = vmul.f32 %v1340, 0.6931472
      %v1342 = vmul.f32 -0.5, %v1224
      %v1343 = vadd.f32 %v1342, 1.0
      %v1344 = vmul.f32 %v1343, %v1224
      %v1345 = vand.u32 2147483647, %v1224
      %vm1346 = vcmp.lt.f32.partialorder %v1345, 0.0004427343
      %v1347 = vsel %vm1346, %v1344, %v1341
      %v1348 = vadd.f32 %v1226, 1.0
      %v1349 = vlog2.pop %v1348
      %v1350 = vmul.f32 %v1349, 0.6931472
      %v1351 = vmul.f32 -0.5, %v1226
      %v1352 = vadd.f32 %v1351, 1.0
      %v1353 = vmul.f32 %v1352, %v1226
      %v1354 = vand.u32 2147483647, %v1226
      %vm1355 = vcmp.lt.f32.partialorder %v1354, 0.0004427343
      %v1356 = vsel %vm1355, %v1353, %v1350
      %v1357 = vadd.f32 %v1228, 1.0
      %v1358 = vlog2.pop %v1357
      %v1359 = vmul.f32 %v1358, 0.6931472
      %v1360 = vmul.f32 -0.5, %v1228
      %v1361 = vadd.f32 %v1360, 1.0
      %v1362 = vmul.f32 %v1361, %v1228
      %v1363 = vand.u32 2147483647, %v1228
      %vm1364 = vcmp.lt.f32.partialorder %v1363, 0.0004427343
      %v1365 = vsel %vm1364, %v1362, %v1359
      %v1366 = vadd.f32 %v1230, 1.0
      %v1367 = vlog2.pop %v1366
      %v1368 = vmul.f32 %v1367, 0.6931472
      %v1369 = vmul.f32 -0.5, %v1230
      %v1370 = vadd.f32 %v1369, 1.0
      %v1371 = vmul.f32 %v1370, %v1230
      %v1372 = vand.u32 2147483647, %v1230
      %vm1373 = vcmp.lt.f32.partialorder %v1372, 0.0004427343
      %v1374 = vsel %vm1373, %v1371, %v1368
      %v1375 = vadd.f32 %v1135, %v1239
      %v1376 = vadd.f32 %v1136, %v1248
      %v1377 = vadd.f32 %v1137, %v1257
      %v1378 = vadd.f32 %v1138, %v1266
      %v1379 = vadd.f32 %v1139, %v1275
      %v1380 = vadd.f32 %v1140, %v1284
      %v1381 = vadd.f32 %v1141, %v1293
      %v1382 = vadd.f32 %v1142, %v1302
      %v1383 = vadd.f32 %v1143, %v1311
      %v1384 = vadd.f32 %v1144, %v1320
      %v1385 = vadd.f32 %v1145, %v1329
      %v1386 = vadd.f32 %v1146, %v1338
      %v1387 = vadd.f32 %v1147, %v1347
      %v1388 = vadd.f32 %v1148, %v1356
      %v1389 = vadd.f32 %v1149, %v1365
      %v1390 = vadd.f32 %v1150, %v1374
      %v1391 = vld [vmem:[%s8] sm:$0xff]
      %v1392 = vadd.f32 %v1375, %v1383
      %v1393 = vadd.f32 %v1376, %v1384
      %v1394 = vadd.f32 %v1377, %v1385
      %v1395 = vadd.f32 %v1378, %v1386
      %v1396 = vadd.f32 %v1379, %v1387
      %v1397 = vadd.f32 %v1380, %v1388
      %v1398 = vadd.f32 %v1381, %v1389
      %v1399 = vadd.f32 %v1382, %v1390
      %v1400 = vadd.f32 %v1392, %v1393
      %v1401 = vadd.f32 %v1400, %v1394
      %v1402 = vadd.f32 %v1401, %v1395
      %v1403 = vadd.f32 %v1402, %v1396
      %v1404 = vadd.f32 %v1403, %v1397
      %v1405 = vadd.f32 %v1404, %v1398
      %v1406 = vadd.f32 %v1405, %v1399
      %v1407 = vadd.f32 %v1391, %v1406
      %1408 = vst [vmem:[%s8] sm:$0xff] %v1407
      %v1409 = vld [vmem:[%s9] sm:$0xff]
      %v1410 = vadd.f32 %v1039, %v1047
      %v1411 = vadd.f32 %v1040, %v1048
      %v1412 = vadd.f32 %v1041, %v1049
      %v1413 = vadd.f32 %v1042, %v1050
      %v1414 = vadd.f32 %v1043, %v1051
      %v1415 = vadd.f32 %v1044, %v1052
      %v1416 = vadd.f32 %v1045, %v1053
      %v1417 = vadd.f32 %v1046, %v1054
      %v1418 = vadd.f32 %v1410, %v1411
      %v1419 = vadd.f32 %v1418, %v1412
      %v1420 = vadd.f32 %v1419, %v1413
      %v1421 = vadd.f32 %v1420, %v1414
      %v1422 = vadd.f32 %v1421, %v1415
      %v1423 = vadd.f32 %v1422, %v1416
      %v1424 = vadd.f32 %v1423, %v1417
      %v1425 = vadd.f32 %v1409, %v1424
      %1426 = vst [vmem:[%s9] sm:$0xff] %v1425
    $region45: #{bayesian_linear_forward.1} parent=36 // pred_fallthru
      _
  $region37: #{bayesian_linear_forward.1} parent=0 // pred_fallthru
    _
  %v1427 = vld [vmem:[%s0] sm:$0xf]
  %v1428 = vld [vmem:[%s0 + $0x4] sm:$0xf]
  %v1429 = vpack.c.bf16 %v359, %v358
  %v1430 = vpack.c.bf16 %v361, %v360
  %v1431 = vpack.c.bf16 %v363, %v362
  %v1432 = vpack.c.bf16 %v365, %v364
  %v1433 = vpack.c.bf16 %v367, %v366
  %v1434 = vpack.c.bf16 %v369, %v368
  %v1435 = vpack.c.bf16 %v371, %v370
  %v1436 = vpack.c.bf16 %v373, %v372
  %v1439 = vunpack.c.l.b16 %v1427
  %v1440 = vunpack.c.l.b16 %v1428
  %v1441 = vpack.c.b16 %v1440, %v1439
  %1443 = vmatprep.subr.bf16.mxu0 0
  %1444 = vmatpush1.bf16.xpose.msra.mxu0 %v1429
  %1445 = vmatprep.subr.bf16.mxu0 0
  %1446 = vmatpush1.bf16.xpose.msra.mxu0 %v1430
  %1447 = vmatprep.subr.bf16.mxu0 0
  %1448 = vmatpush1.bf16.xpose.msra.mxu0 %v1431
  %1449 = vmatprep.subr.bf16.mxu0 0
  %1450 = vmatpush1.bf16.xpose.msra.mxu0 %v1432
  %1451 = vmatprep.subr.bf16.mxu0 0
  %1452 = vmatpush1.bf16.xpose.msra.mxu0 %v1433
  %1453 = vmatprep.subr.bf16.mxu0 0
  %1454 = vmatpush1.bf16.xpose.msra.mxu0 %v1434
  %1455 = vmatprep.subr.bf16.mxu0 0
  %1456 = vmatpush1.bf16.xpose.msra.mxu0 %v1435
  %1457 = vmatprep.subr.bf16.mxu0 0
  %1458 = vmatpush1.bf16.xpose.msra.mxu0 %v1436
  %1459 = vmatprep.subr.bf16.mxu0 0
  %1460 = vmatpush1.bf16.xpose.msra.mxu0 0
  %1461 = vmatprep.subr.bf16.mxu0 0
  %1462 = vmatpush1.bf16.xpose.msra.mxu0 0
  %1463 = vmatprep.subr.bf16.mxu0 0
  %1464 = vmatpush1.bf16.xpose.msra.mxu0 0
  %1465 = vmatprep.subr.bf16.mxu0 0
  %1466 = vmatpush1.bf16.xpose.msra.mxu0 0
  %1467 = vmatprep.subr.bf16.mxu0 0
  %1468 = vmatpush1.bf16.xpose.msra.mxu0 0
  %1469 = vmatprep.subr.bf16.mxu0 0
  %1470 = vmatpush1.bf16.xpose.msra.mxu0 0
  %1471 = vmatprep.subr.bf16.mxu0 0
  %1472 = vmatpush1.bf16.xpose.msra.mxu0 0
  %1473 = vmatprep.subr.bf16.mxu0 0
  %1474 = vmatpush1.bf16.xpose.msra.mxu0 0
  %1475 = vmatprep.mubr.bf16.mxu0 0
  %1476 = vmatmul.mubr.bf16.gmra.mrb[0].mxu0 %v1441
  %v1477 = vpop.f32.mrb[0].mxu0
  %v1478 = vadd.f32 0.0, %v1477
  %v1479 = vpop.f32.mrb[0].mxu0
  %v1480 = vpop.f32.mrb[0].mxu0
  %v1481 = vadd.f32 0.0, %v1480
  %v1482 = vpop.f32.mrb[0].mxu0
  %1483 = vdwg.mxu0
  %v1484 = vld [vmem:[%s7] sm:$0xff]
  %v1485 = vld [vmem:[%s7 + $0x8] sm:$0xff]
  %v1486 = vadd.f32 %v1484, %v1478
  %v1487 = vadd.f32 %v1485, %v1481
  %1488 = vst [vmem:[%s7] sm:$0xff] %v1486
  %1489 = vst [vmem:[%s7 + $0x8] sm:$0xff] %v1487
  // Predicated region
  $region46: #{bayesian_linear_forward.1} parent=0 // pred_check
    %p1490 = pneg %p30
  $region47: #{bayesian_linear_forward.1} parent=0 // pred_check_branch
    %1492 = sbr.rel (%p1490) target = $region49
  $region48: #{bayesian_linear_forward.1} parent=0 // pred_region
    %v1493 = vld [vmem:[%s4] sm:$0x1]
    %v1494 = vld [vmem:[%s5] sm:$0x1]
    %v1495 = vld [vmem:[%s6] sm:$0x1]
    %v1496 = vmax.f32 %v1494, 0.0
    %v1497 = vand.u32 2147483647, %v1494
    %v1498 = vsub.f32 0.0, %v1497
    %v1499 = vmul.f32 %v1498, 1.442695
    %v1500 = vpow.pop %v1499
    %v1501 = vadd.f32 %v1500, 1.0
    %v1502 = vlog2.pop %v1501
    %v1503 = vmul.f32 %v1502, 0.6931472
    %v1504 = vmul.f32 -0.5, %v1500
    %v1505 = vadd.f32 %v1504, 1.0
    %v1506 = vmul.f32 %v1505, %v1500
    %v1507 = vand.u32 2147483647, %v1500
    %vm1508 = vcmp.lt.f32.partialorder %v1507, 0.0004427343
    %v1509 = vsel %vm1508, %v1506, %v1503
    %v1510 = vadd.f32 %v1496, %v1509
    %v1511 = vmul.f32 %v1510, %v1495
    %v1512 = vadd.f32 %v1493, %v1511
    %v1513 = vld [vmem:[%s7] sm:$0xff]
    %v1514 = vld [vmem:[%s7 + $0x8] sm:$0xff]
    %v1516 = vlaneseq
    %v1517 = vshrl.u32 %v1516, 7
    %v1518 = vsub.s32 0, %v1517
    %v1519 = vrot.slane %v1512, %v1518
    %v1521 = vadd.f32 %v1513, %v1519
    %v1522 = vadd.f32 %v1514, %v1519
    %1523 = vst [vmem:[%s7] sm:$0xff] %v1521
    %1524 = vst [vmem:[%s7 + $0x8] sm:$0xff] %v1522
    // Predicated region
    $region50: #{bayesian_linear_forward.1} parent=48 // pred_check
      %p1525 = pneg %p374
    $region51: #{bayesian_linear_forward.1} parent=48 // pred_check_branch
      %1527 = sbr.rel (%p1525) target = $region53
    $region52: #{bayesian_linear_forward.1} parent=48 // pred_region
      %v1528 = vlog2.pop %v1510
      %v1529 = vmul.f32 %v1528, 0.6931472
      %v1530 = vsub.f32 -0.9189385, %v1529
      %v1531 = vmul.f32 %v1495, %v1495
      %v1532 = vmul.f32 %v1531, 0.5
      %v1533 = vsub.f32 %v1530, %v1532
      %v1534 = vmul.f32 %v1512, %v1512
      %v1535 = vmul.f32 %v1534, 0.5
      %v1536 = vsub.f32 -1.6120857, %v1535
      %v1537 = vmul.f32 %v1534, 81377.4
      %v1538 = vsub.f32 4.387914, %v1537
      %v1539 = vmax.f32 %v1536, %v1538
      %v1540 = vsub.f32 %v1536, %v1538
      %v1541 = vand.u32 2147483647, %v1540
      %v1542 = vsub.f32 0.0, %v1541
      %v1543 = vmul.f32 %v1542, 1.442695
      %v1544 = vpow.pop %v1543
      %v1545 = vadd.f32 %v1544, 1.0
      %v1546 = vlog2.pop %v1545
      %v1547 = vmul.f32 %v1546, 0.6931472
      %v1548 = vmul.f32 -0.5, %v1544
      %v1549 = vadd.f32 %v1548, 1.0
      %v1550 = vmul.f32 %v1549, %v1544
      %v1551 = vand.u32 2147483647, %v1544
      %vm1552 = vcmp.lt.f32.partialorder %v1551, 0.0004427343
      %v1553 = vsel %vm1552, %v1550, %v1547
      %v1554 = vadd.f32 %v1539, %v1553
      %s1555 = smul.u32 0, 128
      %v1556 = vlaneseq
      %v1557 = vand.u32 %v1556, 127
      %v1558 = vstv %s1555
      %v1559 = vadd.s32 %v1558, %v1557
      %vm1560 = vcmp.lt.s32.totalorder %v1559, 16
      %v1561 = vsel %vm1560, %v1533, 0.0
      %v1562 = vsel %vm1560, %v1554, 0.0
      %v1563 = vld [vmem:[%s8] sm:$0x1]
      %v1564 = vadd.f32 %v1563, %v1562
      %1565 = vst [vmem:[%s8] sm:$0x1] %v1564
      %v1566 = vld [vmem:[%s9] sm:$0x1]
      %v1567 = vadd.f32 %v1566, %v1561
      %1568 = vst [vmem:[%s9] sm:$0x1] %v1567
    $region53: #{bayesian_linear_forward.1} parent=48 // pred_fallthru
      _
  $region49: #{bayesian_linear_forward.1} parent=0 // pred_fallthru
    _
  // Predicated region
  $region54: #{bayesian_linear_forward.1} parent=0 // pred_check
    _
  $region55: #{bayesian_linear_forward.1} parent=0 // pred_check_branch
    %1570 = sbr.rel (0) target = $region57
  $region56: #{bayesian_linear_forward.1} parent=0 // pred_region
    _
  $region57: #{bayesian_linear_forward.1} parent=0 // pred_fallthru
    _
  // Predicated region
  $region58: #{bayesian_linear_forward.1} parent=0 // pred_check
    _
  $region59: #{bayesian_linear_forward.1} parent=0 // pred_check_branch
    %1572 = sbr.rel (0) target = $region61
  $region60: #{bayesian_linear_forward.1} parent=0 // pred_region
    _
  $region61: #{bayesian_linear_forward.1} parent=0 // pred_fallthru
    _
  // Predicated region
  $region62: #{bayesian_linear_forward.1} parent=0 // pred_check
    _
  $region63: #{bayesian_linear_forward.1} parent=0 // pred_check_branch
    %1574 = sbr.rel (0) target = $region65
  $region64: #{bayesian_linear_forward.1} parent=0 // pred_region
    _
  $region65: #{bayesian_linear_forward.1} parent=0 // pred_fallthru
    _
  // Predicated region
  $region66: #{bayesian_linear_forward.1} parent=0 // pred_check
    _
  $region67: #{bayesian_linear_forward.1} parent=0 // pred_check_branch
    %1576 = sbr.rel (0) target = $region69
  $region68: #{bayesian_linear_forward.1} parent=0 // pred_region
    _
  $region69: #{bayesian_linear_forward.1} parent=0 // pred_fallthru
    _
  // Predicated region
  $region70: #{bayesian_linear_forward.1} parent=0 // pred_check
    _
  $region71: #{bayesian_linear_forward.1} parent=0 // pred_check_branch
    %1578 = sbr.rel (0) target = $region73
  $region72: #{bayesian_linear_forward.1} parent=0 // pred_region
    _
  $region73: #{bayesian_linear_forward.1} parent=0 // pred_fallthru
    _
  // Predicated region
  $region74: #{bayesian_linear_forward.1} parent=0 // pred_check
    _
  $region75: #{bayesian_linear_forward.1} parent=0 // pred_check_branch
    %1580 = sbr.rel (0) target = $region77
  $region76: #{bayesian_linear_forward.1} parent=0 // pred_region
    _
  $region77: #{bayesian_linear_forward.1} parent=0 // pred_fallthru
    _

</llo_original>
